<compile_context>
chip_gen: v7x
topology: tpu7x:2x2x1
jax: 0.10.0
libtpu: 0.0.40
codegen_flags: <defaults>
</compile_context>

<pallas_src>
import jax
import jax.numpy as jnp
from jax.experimental import pallas as pl
from jax.experimental.pallas import tpu as pltpu


def _round_up(n, m):
    return ((n + m - 1) // m) * m


def _pad_cols(a, w):
    pad = w - a.shape[-1]
    return a if pad == 0 else jnp.pad(a, ((0, 0), (0, pad)))


def _pad_rows(a, r):
    pad = r - a.shape[0]
    return a if pad == 0 else jnp.pad(a, ((0, pad), (0, 0)))


def make_vae_kernel(input_dim_padded, hidden_dim, latent_dim):
    Dp, H, L = input_dim_padded, hidden_dim, latent_dim

    def vae_kernel(x_ref, noise_ref, w1_ref, w2_ref, wmv_ref, wd2_ref, wd3_ref,
                   const_ref, recon_ref, mlv_ref):
        f32 = jnp.float32
        bf16 = jnp.bfloat16

        # One DMA worth of packed small constants; static slices are cheap.
        c = const_ref[...]                       # (8, W) f32
        b1 = c[0:1, :H]
        b2 = c[1:2, :L]
        bmv = c[2:3, :128]                       # [bm | bv | 0-pad]
        wd1_r0 = c[3:4, :L]
        wd1_r1 = c[4:5, :L]
        bd1 = c[5:6, :L]
        bd2 = c[6:7, :H]
        bd3 = c[7:8, :Dp]

        x = x_ref[...]                           # (tile_b, Dp) bf16

        # ---- encoder: Linear -> ReLU -> Linear -> ReLU (bf16 MXU, f32 acc) --
        h = jnp.dot(x, w1_ref[...], preferred_element_type=f32) + b1
        h = jnp.maximum(h, 0.0)
        z = jnp.dot(h.astype(bf16), w2_ref[...], preferred_element_type=f32) + b2
        z = jnp.maximum(z, 0.0)

        # ---- fused heads: (L, 128) bf16 matmul -> [mean | logvar | 0-pad] ---
        mlv = jnp.dot(z.astype(bf16), wmv_ref[...],
                      preferred_element_type=f32) + bmv
        mean = mlv[:, 0:2]
        logv = mlv[:, 2:4]

        # ---- reparametrize: noise ~ U[0,1) (torch.rand_like), from host -----
        sample = mean + noise_ref[...] * jnp.exp(0.5 * logv)

        # ---- decoder ---------------------------------------------------------
        # First layer has K=2: VPU broadcast-MADs instead of a padded MXU pass.
        d = sample[:, 0:1] * wd1_r0 + sample[:, 1:2] * wd1_r1 + bd1
        d = jnp.maximum(d, 0.0)
        d = jnp.dot(d.astype(bf16), wd2_ref[...], preferred_element_type=f32) + bd2
        d = jnp.maximum(d, 0.0)
        logits = jnp.dot(d.astype(bf16), wd3_ref[...],
                         preferred_element_type=f32) + bd3

        recon_ref[...] = jax.nn.sigmoid(logits)  # f32, EUP path
        mlv_ref[...] = mlv                       # lane-dense (tile_b, 128)

    return vae_kernel


def vae_forward(x, params, noise, *, tile_b=None):
    """Returns (reconstruction, mean, log_variance), matching VAE.forward."""
    B, D = x.shape
    H = params["b1"].shape[1]
    L = params["b2"].shape[1]
    f32, bf16 = jnp.float32, jnp.bfloat16

    # Pad the feature axis to a lane multiple so big loads/stores and the two
    # big matmul edge dims are 128-aligned (matters for MNIST's 784).
    Dp = _round_up(max(D, 128), 128)
    W = _round_up(max(Dp, H, L, 128), 128)       # packed-constants row width

    # Batch tiling: two grid steps by default so both v7x TensorCores get a
    # tile ("parallel" grid axis); single full-batch step otherwise.
    if tile_b is None:
        tile_b = B // 2 if (B % 2 == 0 and (B // 2) % 8 == 0) else B
    assert B % tile_b == 0, "batch must be a multiple of the batch tile"
    assert tile_b % 8 == 0 or tile_b == B

    # --- big weights: bf16 (native MXU dtype, half the resident VMEM/DMA) ----
    x_p = _pad_cols(x, Dp).astype(bf16)
    w1 = _pad_rows(params["w1"], Dp).astype(bf16)        # (Dp, H)
    w2 = params["w2"].astype(bf16)                       # (H, L)
    wd2 = params["wd2"].astype(bf16)                     # (L, H)
    wd3 = _pad_cols(params["wd3"], Dp).astype(bf16)      # (H, Dp)
    # Fused + lane-padded mean/log-variance head: (L, 128) bf16.
    wmv = _pad_cols(jnp.concatenate([params["wm"], params["wv"]], axis=1),
                    128).astype(bf16)

    # --- pack the 8 tiny f32 constants into one (8, W) array -----------------
    bmv = jnp.concatenate([params["bm"], params["bv"]], axis=1)        # (1, 4)
    consts = jnp.concatenate([
        _pad_cols(params["b1"], W),
        _pad_cols(params["b2"], W),
        _pad_cols(bmv, W),
        _pad_cols(params["wd1"][0:1, :], W),
        _pad_cols(params["wd1"][1:2, :], W),
        _pad_cols(params["bd1"], W),
        _pad_cols(params["bd2"], W),
        _pad_cols(_pad_cols(params["bd3"], Dp), W),
    ], axis=0).astype(f32)                                             # (8, W)

    in_arrays = [x_p, noise, w1, w2, wmv, wd2, wd3, consts]

    def batch_spec(cols):
        return pl.BlockSpec((tile_b, cols), lambda i: (i, 0))

    def const_spec(arr):
        # Full array resident in VMEM; block index never changes -> no re-DMA.
        return pl.BlockSpec(arr.shape, lambda i: (0, 0))

    in_specs = [batch_spec(Dp), batch_spec(2)]
    in_specs += [const_spec(a) for a in in_arrays[2:]]

    out_shape = (
        jax.ShapeDtypeStruct((B, Dp), f32),     # reconstruction (padded cols)
        jax.ShapeDtypeStruct((B, 128), f32),    # packed [mean | logv | pad]
    )
    out_specs = (batch_spec(Dp), batch_spec(128))

    recon, mlv = pl.pallas_call(
        make_vae_kernel(Dp, H, L),
        out_shape=out_shape,
        grid=(B // tile_b,),
        in_specs=in_specs,
        out_specs=out_specs,
        compiler_params=pltpu.CompilerParams(
            dimension_semantics=("parallel",)),
    )(*in_arrays)

    recon = recon[:, :D] if Dp != D else recon
    return recon, mlv[:, 0:2], mlv[:, 2:4]


def _init_linear(key, fan_in, fan_out):
    # PyTorch nn.Linear default init: U(-1/sqrt(fan_in), 1/sqrt(fan_in)).
    kw, kb = jax.random.split(key)
    bound = 1.0 / (fan_in ** 0.5)
    w = jax.random.uniform(kw, (fan_in, fan_out), jnp.float32, -bound, bound)
    b = jax.random.uniform(kb, (1, fan_out), jnp.float32, -bound, bound)
    return w, b


def init_params(key, input_dim, hidden_dim, latent_dim):
    ks = jax.random.split(key, 7)
    p = {}
    p["w1"], p["b1"] = _init_linear(ks[0], input_dim, hidden_dim)
    p["w2"], p["b2"] = _init_linear(ks[1], hidden_dim, latent_dim)
    p["wm"], p["bm"] = _init_linear(ks[2], latent_dim, 2)
    p["wv"], p["bv"] = _init_linear(ks[3], latent_dim, 2)
    p["wd1"], p["bd1"] = _init_linear(ks[4], 2, latent_dim)
    p["wd2"], p["bd2"] = _init_linear(ks[5], latent_dim, hidden_dim)
    p["wd3"], p["bd3"] = _init_linear(ks[6], hidden_dim, input_dim)
    return p


def ref_forward(x, noise, p):
    """Pure-JAX reference with the same bf16 quantization as the kernel."""
    f32, bf16 = jnp.float32, jnp.bfloat16
    xb = x.astype(bf16)
    h = jnp.maximum(jnp.dot(xb, p["w1"].astype(bf16),
                            preferred_element_type=f32) + p["b1"], 0.0)
    z = jnp.maximum(jnp.dot(h.astype(bf16), p["w2"].astype(bf16),
                            preferred_element_type=f32) + p["b2"], 0.0)
    zb = z.astype(bf16)
    mean = jnp.dot(zb, p["wm"].astype(bf16), preferred_element_type=f32) + p["bm"]
    logv = jnp.dot(zb, p["wv"].astype(bf16), preferred_element_type=f32) + p["bv"]
    sample = mean + noise * jnp.exp(0.5 * logv)
    d = jnp.maximum(sample @ p["wd1"] + p["bd1"], 0.0)
    d = jnp.maximum(jnp.dot(d.astype(bf16), p["wd2"].astype(bf16),
                            preferred_element_type=f32) + p["bd2"], 0.0)
    logits = jnp.dot(d.astype(bf16), p["wd3"].astype(bf16),
                     preferred_element_type=f32) + p["bd3"]
    return jax.nn.sigmoid(logits), mean, logv


if __name__ == "__main__":
    input_dim, hidden_dim, latent_dim = 256, 128, 64
    batch = 256

    key = jax.random.PRNGKey(0)
    kp, kx, kn = jax.random.split(key, 3)
    params = init_params(kp, input_dim, hidden_dim, latent_dim)
    x = jax.random.uniform(kx, (batch, input_dim), dtype=jnp.float32)
    # torch.rand_like -> uniform [0, 1)
    noise = jax.random.uniform(kn, (batch, 2), dtype=jnp.float32)

    recon, mean, logv = vae_forward(x, params, noise)
    jax.block_until_ready((recon, mean, logv))

    r_ref, m_ref, lv_ref = ref_forward(x, noise, params)
    assert recon.shape == (batch, input_dim)
    assert mean.shape == (batch, 2) and logv.shape == (batch, 2)
    assert jnp.allclose(mean, m_ref, atol=2e-2, rtol=2e-2)
    assert jnp.allclose(logv, lv_ref, atol=2e-2, rtol=2e-2)
    assert jnp.allclose(recon, r_ref, atol=2e-2, rtol=2e-2)
    assert bool(jnp.all(jnp.isfinite(recon)))
    assert bool(jnp.all((recon >= 0.0) & (recon <= 1.0)))

    print("KERNEL_OK")
</pallas_src>

<mosaic_0001>
module attributes {stable_mosaic.version = 11 : i64} {
  func.func @vae_kernel(%arg0: i32, %arg1: memref<128x256xbf16, #tpu.memory_space<vmem>>, %arg2: memref<128x2xf32, #tpu.memory_space<vmem>>, %arg3: memref<256x128xbf16, #tpu.memory_space<vmem>>, %arg4: memref<128x64xbf16, #tpu.memory_space<vmem>>, %arg5: memref<64x128xbf16, #tpu.memory_space<vmem>>, %arg6: memref<64x128xbf16, #tpu.memory_space<vmem>>, %arg7: memref<128x256xbf16, #tpu.memory_space<vmem>>, %arg8: memref<8x256xf32, #tpu.memory_space<vmem>>, %arg9: memref<128x256xf32, #tpu.memory_space<vmem>>, %arg10: memref<128x128xf32, #tpu.memory_space<vmem>>) attributes {dimension_semantics = [#tpu.dimension_semantics<parallel>], iteration_bounds = array<i64: 2>, scalar_prefetch = 0 : i64, scratch_operands = 0 : i64, tpu.core_type = #tpu.core_type<tc>, window_params = [{transform_indices = @transform_0, window_bounds = array<i64: 128, 256>}, {transform_indices = @transform_1, window_bounds = array<i64: 128, 2>}, {pipeline_mode = #tpu.pipeline_mode<synchronous>, transform_indices = @transform_2, window_bounds = array<i64: 256, 128>}, {pipeline_mode = #tpu.pipeline_mode<synchronous>, transform_indices = @transform_3, window_bounds = array<i64: 128, 64>}, {pipeline_mode = #tpu.pipeline_mode<synchronous>, transform_indices = @transform_4, window_bounds = array<i64: 64, 128>}, {pipeline_mode = #tpu.pipeline_mode<synchronous>, transform_indices = @transform_5, window_bounds = array<i64: 64, 128>}, {pipeline_mode = #tpu.pipeline_mode<synchronous>, transform_indices = @transform_6, window_bounds = array<i64: 128, 256>}, {pipeline_mode = #tpu.pipeline_mode<synchronous>, transform_indices = @transform_7, window_bounds = array<i64: 8, 256>}, {transform_indices = @transform_8, window_bounds = array<i64: 128, 256>}, {transform_indices = @transform_9, window_bounds = array<i64: 128, 128>}]} {
    %c0 = arith.constant 0 : index
    %c0_0 = arith.constant 0 : index
    %0 = vector.load %arg8[%c0, %c0_0] : memref<8x256xf32, #tpu.memory_space<vmem>>, vector<8x256xf32>
    %1 = vector.extract_strided_slice %0 {offsets = [0, 0], sizes = [1, 128], strides = [1, 1]} : vector<8x256xf32> to vector<1x128xf32>
    %2 = vector.extract_strided_slice %0 {offsets = [1, 0], sizes = [1, 64], strides = [1, 1]} : vector<8x256xf32> to vector<1x64xf32>
    %3 = vector.extract_strided_slice %0 {offsets = [2, 0], sizes = [1, 128], strides = [1, 1]} : vector<8x256xf32> to vector<1x128xf32>
    %4 = vector.extract_strided_slice %0 {offsets = [3, 0], sizes = [1, 64], strides = [1, 1]} : vector<8x256xf32> to vector<1x64xf32>
    %5 = vector.extract_strided_slice %0 {offsets = [4, 0], sizes = [1, 64], strides = [1, 1]} : vector<8x256xf32> to vector<1x64xf32>
    %6 = vector.extract_strided_slice %0 {offsets = [5, 0], sizes = [1, 64], strides = [1, 1]} : vector<8x256xf32> to vector<1x64xf32>
    %7 = vector.extract_strided_slice %0 {offsets = [6, 0], sizes = [1, 128], strides = [1, 1]} : vector<8x256xf32> to vector<1x128xf32>
    %8 = vector.extract_strided_slice %0 {offsets = [7, 0], sizes = [1, 256], strides = [1, 1]} : vector<8x256xf32> to vector<1x256xf32>
    %c0_1 = arith.constant 0 : index
    %c0_2 = arith.constant 0 : index
    %9 = vector.load %arg1[%c0_1, %c0_2] : memref<128x256xbf16, #tpu.memory_space<vmem>>, vector<128x256xbf16>
    %c0_3 = arith.constant 0 : index
    %c0_4 = arith.constant 0 : index
    %10 = vector.load %arg3[%c0_3, %c0_4] : memref<256x128xbf16, #tpu.memory_space<vmem>>, vector<256x128xbf16>
    %cst = arith.constant dense<0.000000e+00> : vector<128x128xf32>
    %11 = tpu.matmul %9, %10, %cst {dimension_numbers = #tpu.dot_dimension_numbers<[1], [0], [0], [1], [0, 0, 1, 1], [], []>} : vector<128x256xbf16>, vector<256x128xbf16>, vector<128x128xf32> -> vector<128x128xf32>
    %12 = vector.broadcast %1 : vector<1x128xf32> to vector<128x128xf32>
    %13 = arith.addf %11, %12 : vector<128x128xf32>
    %cst_5 = arith.constant 0.000000e+00 : f32
    %14 = vector.broadcast %cst_5 : f32 to vector<128x128xf32>
    %15 = arith.maximumf %13, %14 : vector<128x128xf32>
    %16 = arith.truncf %15 : vector<128x128xf32> to vector<128x128xbf16>
    %c0_6 = arith.constant 0 : index
    %c0_7 = arith.constant 0 : index
    %17 = vector.load %arg4[%c0_6, %c0_7] : memref<128x64xbf16, #tpu.memory_space<vmem>>, vector<128x64xbf16>
    %cst_8 = arith.constant dense<0.000000e+00> : vector<128x64xf32>
    %18 = tpu.matmul %16, %17, %cst_8 {dimension_numbers = #tpu.dot_dimension_numbers<[1], [0], [0], [1], [0, 0, 1, 1], [], []>} : vector<128x128xbf16>, vector<128x64xbf16>, vector<128x64xf32> -> vector<128x64xf32>
    %19 = vector.broadcast %2 : vector<1x64xf32> to vector<128x64xf32>
    %20 = arith.addf %18, %19 : vector<128x64xf32>
    %cst_9 = arith.constant 0.000000e+00 : f32
    %21 = vector.broadcast %cst_9 : f32 to vector<128x64xf32>
    %22 = arith.maximumf %20, %21 : vector<128x64xf32>
    %23 = arith.truncf %22 : vector<128x64xf32> to vector<128x64xbf16>
    %c0_10 = arith.constant 0 : index
    %c0_11 = arith.constant 0 : index
    %24 = vector.load %arg5[%c0_10, %c0_11] : memref<64x128xbf16, #tpu.memory_space<vmem>>, vector<64x128xbf16>
    %cst_12 = arith.constant dense<0.000000e+00> : vector<128x128xf32>
    %25 = tpu.matmul %23, %24, %cst_12 {dimension_numbers = #tpu.dot_dimension_numbers<[1], [0], [0], [1], [0, 0, 1, 1], [], []>} : vector<128x64xbf16>, vector<64x128xbf16>, vector<128x128xf32> -> vector<128x128xf32>
    %26 = vector.broadcast %3 : vector<1x128xf32> to vector<128x128xf32>
    %27 = arith.addf %25, %26 : vector<128x128xf32>
    %28 = vector.extract_strided_slice %27 {offsets = [0, 0], sizes = [128, 2], strides = [1, 1]} : vector<128x128xf32> to vector<128x2xf32>
    %29 = vector.extract_strided_slice %27 {offsets = [0, 2], sizes = [128, 2], strides = [1, 1]} : vector<128x128xf32> to vector<128x2xf32>
    %c0_13 = arith.constant 0 : index
    %c0_14 = arith.constant 0 : index
    %30 = vector.load %arg2[%c0_13, %c0_14] : memref<128x2xf32, #tpu.memory_space<vmem>>, vector<128x2xf32>
    %cst_15 = arith.constant 5.000000e-01 : f32
    %31 = vector.broadcast %cst_15 : f32 to vector<128x2xf32>
    %32 = arith.mulf %31, %29 : vector<128x2xf32>
    %33 = math.exp %32 : vector<128x2xf32>
    %34 = arith.mulf %30, %33 : vector<128x2xf32>
    %35 = arith.addf %28, %34 : vector<128x2xf32>
    %36 = vector.extract_strided_slice %35 {offsets = [0, 0], sizes = [128, 1], strides = [1, 1]} : vector<128x2xf32> to vector<128x1xf32>
    %37 = vector.broadcast %36 : vector<128x1xf32> to vector<128x64xf32>
    %38 = vector.broadcast %4 : vector<1x64xf32> to vector<128x64xf32>
    %39 = arith.mulf %37, %38 : vector<128x64xf32>
    %40 = vector.extract_strided_slice %35 {offsets = [0, 1], sizes = [128, 1], strides = [1, 1]} : vector<128x2xf32> to vector<128x1xf32>
    %41 = vector.broadcast %40 : vector<128x1xf32> to vector<128x64xf32>
    %42 = vector.broadcast %5 : vector<1x64xf32> to vector<128x64xf32>
    %43 = arith.mulf %41, %42 : vector<128x64xf32>
    %44 = arith.addf %39, %43 : vector<128x64xf32>
    %45 = vector.broadcast %6 : vector<1x64xf32> to vector<128x64xf32>
    %46 = arith.addf %44, %45 : vector<128x64xf32>
    %cst_16 = arith.constant 0.000000e+00 : f32
    %47 = vector.broadcast %cst_16 : f32 to vector<128x64xf32>
    %48 = arith.maximumf %46, %47 : vector<128x64xf32>
    %49 = arith.truncf %48 : vector<128x64xf32> to vector<128x64xbf16>
    %c0_17 = arith.constant 0 : index
    %c0_18 = arith.constant 0 : index
    %50 = vector.load %arg6[%c0_17, %c0_18] : memref<64x128xbf16, #tpu.memory_space<vmem>>, vector<64x128xbf16>
    %cst_19 = arith.constant dense<0.000000e+00> : vector<128x128xf32>
    %51 = tpu.matmul %49, %50, %cst_19 {dimension_numbers = #tpu.dot_dimension_numbers<[1], [0], [0], [1], [0, 0, 1, 1], [], []>} : vector<128x64xbf16>, vector<64x128xbf16>, vector<128x128xf32> -> vector<128x128xf32>
    %52 = vector.broadcast %7 : vector<1x128xf32> to vector<128x128xf32>
    %53 = arith.addf %51, %52 : vector<128x128xf32>
    %cst_20 = arith.constant 0.000000e+00 : f32
    %54 = vector.broadcast %cst_20 : f32 to vector<128x128xf32>
    %55 = arith.maximumf %53, %54 : vector<128x128xf32>
    %56 = arith.truncf %55 : vector<128x128xf32> to vector<128x128xbf16>
    %c0_21 = arith.constant 0 : index
    %c0_22 = arith.constant 0 : index
    %57 = vector.load %arg7[%c0_21, %c0_22] : memref<128x256xbf16, #tpu.memory_space<vmem>>, vector<128x256xbf16>
    %cst_23 = arith.constant dense<0.000000e+00> : vector<128x256xf32>
    %58 = tpu.matmul %56, %57, %cst_23 {dimension_numbers = #tpu.dot_dimension_numbers<[1], [0], [0], [1], [0, 0, 1, 1], [], []>} : vector<128x128xbf16>, vector<128x256xbf16>, vector<128x256xf32> -> vector<128x256xf32>
    %59 = vector.broadcast %8 : vector<1x256xf32> to vector<128x256xf32>
    %60 = arith.addf %58, %59 : vector<128x256xf32>
    %61 = arith.negf %60 : vector<128x256xf32>
    %62 = math.exp %61 : vector<128x256xf32>
    %cst_24 = arith.constant 1.000000e+00 : f32
    %63 = vector.broadcast %cst_24 : f32 to vector<128x256xf32>
    %64 = arith.addf %63, %62 : vector<128x256xf32>
    %65 = arith.divf %63, %64 : vector<128x256xf32>
    %c0_25 = arith.constant 0 : index
    %c0_26 = arith.constant 0 : index
    %66 = vector.load %arg9[%c0_25, %c0_26] : memref<128x256xf32, #tpu.memory_space<vmem>>, vector<128x256xf32>
    tpu.vector_store %arg9[%c0_25, %c0_26], %65 {strides = array<i32>} : memref<128x256xf32, #tpu.memory_space<vmem>>, vector<128x256xf32>,
    %c0_27 = arith.constant 0 : index
    %c0_28 = arith.constant 0 : index
    %67 = vector.load %arg10[%c0_27, %c0_28] : memref<128x128xf32, #tpu.memory_space<vmem>>, vector<128x128xf32>
    tpu.vector_store %arg10[%c0_27, %c0_28], %27 {strides = array<i32>} : memref<128x128xf32, #tpu.memory_space<vmem>>, vector<128x128xf32>,
    return
  }
  func.func @transform_0(%arg0: i32) -> (i32, i32) {
    %c0_i32 = arith.constant 0 : i32
    %c0_i32_0 = arith.constant 0 : i32
    return %arg0, %c0_i32 : i32, i32
  }
  func.func @transform_1(%arg0: i32) -> (i32, i32) {
    %c0_i32 = arith.constant 0 : i32
    %c0_i32_0 = arith.constant 0 : i32
    return %arg0, %c0_i32 : i32, i32
  }
  func.func @transform_2(%arg0: i32) -> (i32, i32) {
    %c0_i32 = arith.constant 0 : i32
    %c0_i32_0 = arith.constant 0 : i32
    %c0_i32_1 = arith.constant 0 : i32
    return %c0_i32, %c0_i32_0 : i32, i32
  }
  func.func @transform_3(%arg0: i32) -> (i32, i32) {
    %c0_i32 = arith.constant 0 : i32
    %c0_i32_0 = arith.constant 0 : i32
    %c0_i32_1 = arith.constant 0 : i32
    return %c0_i32, %c0_i32_0 : i32, i32
  }
  func.func @transform_4(%arg0: i32) -> (i32, i32) {
    %c0_i32 = arith.constant 0 : i32
    %c0_i32_0 = arith.constant 0 : i32
    %c0_i32_1 = arith.constant 0 : i32
    return %c0_i32, %c0_i32_0 : i32, i32
  }
  func.func @transform_5(%arg0: i32) -> (i32, i32) {
    %c0_i32 = arith.constant 0 : i32
    %c0_i32_0 = arith.constant 0 : i32
    %c0_i32_1 = arith.constant 0 : i32
    return %c0_i32, %c0_i32_0 : i32, i32
  }
  func.func @transform_6(%arg0: i32) -> (i32, i32) {
    %c0_i32 = arith.constant 0 : i32
    %c0_i32_0 = arith.constant 0 : i32
    %c0_i32_1 = arith.constant 0 : i32
    return %c0_i32, %c0_i32_0 : i32, i32
  }
  func.func @transform_7(%arg0: i32) -> (i32, i32) {
    %c0_i32 = arith.constant 0 : i32
    %c0_i32_0 = arith.constant 0 : i32
    %c0_i32_1 = arith.constant 0 : i32
    return %c0_i32, %c0_i32_0 : i32, i32
  }
  func.func @transform_8(%arg0: i32) -> (i32, i32) {
    %c0_i32 = arith.constant 0 : i32
    %c0_i32_0 = arith.constant 0 : i32
    return %arg0, %c0_i32 : i32, i32
  }
  func.func @transform_9(%arg0: i32) -> (i32, i32) {
    %c0_i32 = arith.constant 0 : i32
    %c0_i32_0 = arith.constant 0 : i32
    return %arg0, %c0_i32 : i32, i32
  }
}

</mosaic_0001>

<llo_original>
// kernel: tpu_custom_call.1
$region0: #{tpu_custom_call.1}
  #allocation0 [shape = 'u32[]', space=smem, size = 0x4, offset = 0x4, fixed_abs, tag = 'smem constant byte address 0x4 - core index']
  #allocation1 [shape = 'u32[144,128]{1,0:T(1,128)}', space=vmem, size = 0x12000, scoped, tag = 'internal scratch']
  %s0 = inlined_call_operand.vmem [shape: bf16[256,256], index: 0, kind: input, shape index: {}]
  %s1 = inlined_call_operand.vmem [shape: f32[256,2], index: 1, kind: input, shape index: {}]
  %s2 = inlined_call_operand.hbm [shape: bf16[256,128], index: 2, kind: input, shape index: {}]
  %s3 = inlined_call_operand.vmem [shape: bf16[128,64], index: 3, kind: input, shape index: {}]
  %s4 = inlined_call_operand.vmem [shape: bf16[64,128], index: 4, kind: input, shape index: {}]
  %s5 = inlined_call_operand.vmem [shape: bf16[64,128], index: 5, kind: input, shape index: {}]
  %s6 = inlined_call_operand.hbm [shape: bf16[128,256], index: 6, kind: input, shape index: {}]
  %s7 = inlined_call_operand.vmem [shape: f32[8,256], index: 7, kind: input, shape index: {}]
  %s8 = inlined_call_operand.hbm [shape: f32[256,256], index: 8, kind: output, shape index: {0}]
  %s9 = inlined_call_operand.hbm [shape: f32[256,128], index: 9, kind: output, shape index: {1}]
  %10 = xla_tuple %s8, %s9
  %s11 = sld [smem:[#allocation0]]
  $region81: #{tpu_custom_call.1} parent=0
    _
  %s13 = ssub.s32 1, %s11
  %s14 = scalar_select 0, %s13, %s11
  $region1: #{tpu_custom_call.1} parent=0
    #allocation2 [shape = 'u8[65536]{0}', space=vmem, size = 0x10000, scoped, tag = 'input window, operand 2, single buffered']
    #allocation3 [shape = 's32[2]{0}', space=sflag, size = 0x8, scoped, tag = 'scoped memory for tpu_custom_call.1']
    #allocation4 [shape = 's32[2]{0}', space=sflag, size = 0x8, scoped, tag = 'scoped memory for tpu_custom_call.1']
    #allocation5 [shape = 'u8[65536]{0}', space=vmem, size = 0x10000, scoped, tag = 'input window, operand 6, single buffered']
    #allocation6 [shape = 's32[1]{0}', space=sflag, size = 0x4, scoped, tag = 'scoped memory for tpu_custom_call.1']
    #allocation7 [shape = 'u8[262144]{0}', space=vmem, size = 0x40000, scoped, tag = 'output window, operand 0']
    #allocation8 [shape = 'u8[131072]{0}', space=vmem, size = 0x20000, scoped, tag = 'output window, operand 1']
    #allocation9 [shape = 's32[2]{0}', space=sflag, size = 0x8, scoped, tag = 'scoped memory for tpu_custom_call.1']
    %15 = vsyncpa [#allocation3], 0
    %16 = vsyncpa [#allocation6], 0
    %17 = vsyncpa [#allocation4], 0
    %s18 = scalar_lea.sflag [#allocation4], 1
    %19 = vsyncpa %s18, 0
    %20 = vsyncpa [#allocation9], 0
    %s21 = scalar_lea.sflag [#allocation9], 1
    %22 = vsyncpa %s21, 0
    loop: start=0, step=1, limit=4
    $region2: #{tpu_custom_call.1} parent=1 // loop_pre_header
      _
    $region3: #{tpu_custom_call.1} parent=1 // loop_header
      %s24 = sphi 0, %s28
      %p25 = scmp.ge.s32.totalorder %s24, 4
      %s34 = sphi 0, %s36
      %s37 = sphi 0, %s34
      %s38 = sphi 0, %s37
      %s54 = sphi 0, %s38
      %s60 = sphi 0, %s62
      %s63 = sphi 0, %s60
      %s64 = sphi 0, %s63
      %s80 = sphi 0, %s64
      %s84 = sphi 0, %s84
      %s86 = sphi 0, %s84
      %s87 = sphi 0, %s86
      %s101 = sphi 0, %s87
      %s105 = sphi 0, %s105
      %s107 = sphi 0, %s105
      %s108 = sphi 0, %s107
      %s122 = sphi 0, %s108
      %s126 = sphi 0, %s126
      %s128 = sphi 0, %s126
      %s129 = sphi 0, %s128
      %s143 = sphi 0, %s129
      %s147 = sphi 0, %s147
      %s149 = sphi 0, %s147
      %s150 = sphi 0, %s149
      %s164 = sphi 0, %s150
      %s168 = sphi 0, %s168
      %s170 = sphi 0, %s168
      %s171 = sphi 0, %s170
      %s185 = sphi 0, %s171
      %s189 = sphi 0, %s189
      %s191 = sphi 0, %s189
      %s192 = sphi 0, %s191
      %s206 = sphi 0, %s192
      %s212 = sphi 0, %s214
      %s215 = sphi 0, %s212
      %s216 = sphi 0, %s215
      %s232 = sphi 0, %s216
      %s238 = sphi 0, %s240
      %s241 = sphi 0, %s238
      %s242 = sphi 0, %s241
      %s258 = sphi 0, %s242
    $region4: #{tpu_custom_call.1} parent=1 // loop_header_branch
      %27 = sbr.rel (%p25) target = $region8
    $region5: #{tpu_custom_call.1} parent=1 // loop_body
      %s29 = ssub.s32 %s24, 1
      %s30 = ssub.s32 %s24, 2
      %s31 = sadd.s32 %s24, 1
      %s32 = ssub.s32 %s24, %s31
      %p33 = scmp.eq.s32.totalorder %s32, 0
      %s35 = sadd.s32 %s34, 1
      %s36 = scalar_select %p33, %s34, %s35
      %p39 = pneg %p33
      %p40 = scmp.eq.s32.totalorder %s24, 1
      %p41 = por %p39, %p40
      %p42 = scmp.ne.s32.totalorder %s34, %s37
      %p43 = scmp.eq.s32.totalorder %s24, 0
      %p44 = por %p42, %p43
      %p45 = scmp.ne.s32.totalorder %s34, %s37
      %p46 = scmp.eq.s32.totalorder %s29, 1
      %p47 = por %p45, %p46
      %p48 = scmp.ne.s32.totalorder %s37, %s38
      %p49 = scmp.eq.s32.totalorder %s29, 0
      %p50 = por %p48, %p49
      %p51 = scmp.ne.s32.totalorder %s37, %s38
      %p52 = scmp.eq.s32.totalorder %s30, 1
      %p53 = por %p51, %p52
      %p55 = scmp.ne.s32.totalorder %s38, %s54
      %p56 = scmp.eq.s32.totalorder %s30, 0
      %p57 = por %p55, %p56
      %s58 = ssub.s32 %s24, %s31
      %p59 = scmp.eq.s32.totalorder %s58, 0
      %s61 = sadd.s32 %s60, 1
      %s62 = scalar_select %p59, %s60, %s61
      %p65 = pneg %p59
      %p66 = scmp.eq.s32.totalorder %s24, 1
      %p67 = por %p65, %p66
      %p68 = scmp.ne.s32.totalorder %s60, %s63
      %p69 = scmp.eq.s32.totalorder %s24, 0
      %p70 = por %p68, %p69
      %p71 = scmp.ne.s32.totalorder %s60, %s63
      %p72 = scmp.eq.s32.totalorder %s29, 1
      %p73 = por %p71, %p72
      %p74 = scmp.ne.s32.totalorder %s63, %s64
      %p75 = scmp.eq.s32.totalorder %s29, 0
      %p76 = por %p74, %p75
      %p77 = scmp.ne.s32.totalorder %s63, %s64
      %p78 = scmp.eq.s32.totalorder %s30, 1
      %p79 = por %p77, %p78
      %p81 = scmp.ne.s32.totalorder %s64, %s80
      %p82 = scmp.eq.s32.totalorder %s30, 0
      %p83 = por %p81, %p82
      %s85 = sadd.s32 %s84, 1
      %p88 = scmp.eq.s32.totalorder %s24, 1
      %p89 = scmp.ne.s32.totalorder %s84, %s86
      %p90 = scmp.eq.s32.totalorder %s24, 0
      %p91 = por %p89, %p90
      %p92 = scmp.ne.s32.totalorder %s84, %s86
      %p93 = scmp.eq.s32.totalorder %s29, 1
      %p94 = por %p92, %p93
      %p95 = scmp.ne.s32.totalorder %s86, %s87
      %p96 = scmp.eq.s32.totalorder %s29, 0
      %p97 = por %p95, %p96
      %p98 = scmp.ne.s32.totalorder %s86, %s87
      %p99 = scmp.eq.s32.totalorder %s30, 1
      %p100 = por %p98, %p99
      %p102 = scmp.ne.s32.totalorder %s87, %s101
      %p103 = scmp.eq.s32.totalorder %s30, 0
      %p104 = por %p102, %p103
      %s106 = sadd.s32 %s105, 1
      %p109 = scmp.eq.s32.totalorder %s24, 1
      %p110 = scmp.ne.s32.totalorder %s105, %s107
      %p111 = scmp.eq.s32.totalorder %s24, 0
      %p112 = por %p110, %p111
      %p113 = scmp.ne.s32.totalorder %s105, %s107
      %p114 = scmp.eq.s32.totalorder %s29, 1
      %p115 = por %p113, %p114
      %p116 = scmp.ne.s32.totalorder %s107, %s108
      %p117 = scmp.eq.s32.totalorder %s29, 0
      %p118 = por %p116, %p117
      %p119 = scmp.ne.s32.totalorder %s107, %s108
      %p120 = scmp.eq.s32.totalorder %s30, 1
      %p121 = por %p119, %p120
      %p123 = scmp.ne.s32.totalorder %s108, %s122
      %p124 = scmp.eq.s32.totalorder %s30, 0
      %p125 = por %p123, %p124
      %s127 = sadd.s32 %s126, 1
      %p130 = scmp.eq.s32.totalorder %s24, 1
      %p131 = scmp.ne.s32.totalorder %s126, %s128
      %p132 = scmp.eq.s32.totalorder %s24, 0
      %p133 = por %p131, %p132
      %p134 = scmp.ne.s32.totalorder %s126, %s128
      %p135 = scmp.eq.s32.totalorder %s29, 1
      %p136 = por %p134, %p135
      %p137 = scmp.ne.s32.totalorder %s128, %s129
      %p138 = scmp.eq.s32.totalorder %s29, 0
      %p139 = por %p137, %p138
      %p140 = scmp.ne.s32.totalorder %s128, %s129
      %p141 = scmp.eq.s32.totalorder %s30, 1
      %p142 = por %p140, %p141
      %p144 = scmp.ne.s32.totalorder %s129, %s143
      %p145 = scmp.eq.s32.totalorder %s30, 0
      %p146 = por %p144, %p145
      %s148 = sadd.s32 %s147, 1
      %p151 = scmp.eq.s32.totalorder %s24, 1
      %p152 = scmp.ne.s32.totalorder %s147, %s149
      %p153 = scmp.eq.s32.totalorder %s24, 0
      %p154 = por %p152, %p153
      %p155 = scmp.ne.s32.totalorder %s147, %s149
      %p156 = scmp.eq.s32.totalorder %s29, 1
      %p157 = por %p155, %p156
      %p158 = scmp.ne.s32.totalorder %s149, %s150
      %p159 = scmp.eq.s32.totalorder %s29, 0
      %p160 = por %p158, %p159
      %p161 = scmp.ne.s32.totalorder %s149, %s150
      %p162 = scmp.eq.s32.totalorder %s30, 1
      %p163 = por %p161, %p162
      %p165 = scmp.ne.s32.totalorder %s150, %s164
      %p166 = scmp.eq.s32.totalorder %s30, 0
      %p167 = por %p165, %p166
      %s169 = sadd.s32 %s168, 1
      %p172 = scmp.eq.s32.totalorder %s24, 1
      %p173 = scmp.ne.s32.totalorder %s168, %s170
      %p174 = scmp.eq.s32.totalorder %s24, 0
      %p175 = por %p173, %p174
      %p176 = scmp.ne.s32.totalorder %s168, %s170
      %p177 = scmp.eq.s32.totalorder %s29, 1
      %p178 = por %p176, %p177
      %p179 = scmp.ne.s32.totalorder %s170, %s171
      %p180 = scmp.eq.s32.totalorder %s29, 0
      %p181 = por %p179, %p180
      %p182 = scmp.ne.s32.totalorder %s170, %s171
      %p183 = scmp.eq.s32.totalorder %s30, 1
      %p184 = por %p182, %p183
      %p186 = scmp.ne.s32.totalorder %s171, %s185
      %p187 = scmp.eq.s32.totalorder %s30, 0
      %p188 = por %p186, %p187
      %s190 = sadd.s32 %s189, 1
      %p193 = scmp.eq.s32.totalorder %s24, 1
      %p194 = scmp.ne.s32.totalorder %s189, %s191
      %p195 = scmp.eq.s32.totalorder %s24, 0
      %p196 = por %p194, %p195
      %p197 = scmp.ne.s32.totalorder %s189, %s191
      %p198 = scmp.eq.s32.totalorder %s29, 1
      %p199 = por %p197, %p198
      %p200 = scmp.ne.s32.totalorder %s191, %s192
      %p201 = scmp.eq.s32.totalorder %s29, 0
      %p202 = por %p200, %p201
      %p203 = scmp.ne.s32.totalorder %s191, %s192
      %p204 = scmp.eq.s32.totalorder %s30, 1
      %p205 = por %p203, %p204
      %p207 = scmp.ne.s32.totalorder %s192, %s206
      %p208 = scmp.eq.s32.totalorder %s30, 0
      %p209 = por %p207, %p208
      %s210 = ssub.s32 %s24, %s31
      %p211 = scmp.eq.s32.totalorder %s210, 0
      %s213 = sadd.s32 %s212, 1
      %s214 = scalar_select %p211, %s212, %s213
      %p217 = pneg %p211
      %p218 = scmp.eq.s32.totalorder %s24, 1
      %p219 = por %p217, %p218
      %p220 = scmp.ne.s32.totalorder %s212, %s215
      %p221 = scmp.eq.s32.totalorder %s24, 0
      %p222 = por %p220, %p221
      %p223 = scmp.ne.s32.totalorder %s212, %s215
      %p224 = scmp.eq.s32.totalorder %s29, 1
      %p225 = por %p223, %p224
      %p226 = scmp.ne.s32.totalorder %s215, %s216
      %p227 = scmp.eq.s32.totalorder %s29, 0
      %p228 = por %p226, %p227
      %p229 = scmp.ne.s32.totalorder %s215, %s216
      %p230 = scmp.eq.s32.totalorder %s30, 1
      %p231 = por %p229, %p230
      %p233 = scmp.ne.s32.totalorder %s216, %s232
      %p234 = scmp.eq.s32.totalorder %s30, 0
      %p235 = por %p233, %p234
      %s236 = ssub.s32 %s24, %s31
      %p237 = scmp.eq.s32.totalorder %s236, 0
      %s239 = sadd.s32 %s238, 1
      %s240 = scalar_select %p237, %s238, %s239
      %p243 = pneg %p237
      %p244 = scmp.eq.s32.totalorder %s24, 1
      %p245 = por %p243, %p244
      %p246 = scmp.ne.s32.totalorder %s238, %s241
      %p247 = scmp.eq.s32.totalorder %s24, 0
      %p248 = por %p246, %p247
      %p249 = scmp.ne.s32.totalorder %s238, %s241
      %p250 = scmp.eq.s32.totalorder %s29, 1
      %p251 = por %p249, %p250
      %p252 = scmp.ne.s32.totalorder %s241, %s242
      %p253 = scmp.eq.s32.totalorder %s29, 0
      %p254 = por %p252, %p253
      %p255 = scmp.ne.s32.totalorder %s241, %s242
      %p256 = scmp.eq.s32.totalorder %s30, 1
      %p257 = por %p255, %p256
      %p259 = scmp.ne.s32.totalorder %s242, %s258
      %p260 = scmp.eq.s32.totalorder %s30, 0
      %p261 = por %p259, %p260
      %p262 = scmp.le.s32.totalorder 1, %s24
      %p263 = scmp.lt.s32.totalorder %s24, 3
      %p264 = pnand %p262, %p263
      %p265 = pneg %p264
      // Predicated region
      $region9: #{tpu_custom_call.1} parent=5 // pred_check
        _
      $region10: #{tpu_custom_call.1} parent=5 // pred_check_branch
        %267 = sbr.rel (%p264) target = $region12
      $region11: #{tpu_custom_call.1} parent=5 // pred_region
        %s268 = ssub.s32 %s24, 1
        // Predicated region
        $region13: #{tpu_custom_call.1} parent=11 // pred_check
          %p269 = pneg %p97
        $region14: #{tpu_custom_call.1} parent=11 // pred_check_branch
          %271 = sbr.rel (%p269) target = $region16
        $region15: #{tpu_custom_call.1} parent=11 // pred_region
          %s273 = ssub.s32 2048, 2048
          %274 = vsyncadd [#allocation3], %s273
          %s275 = sshll.u32 [#allocation2], 4
          %s276 = int_to_ptr.vmem [resolvable:$true] %s275
          %281 = dma.hbm_to_vmem [thread:$0]  %s2, 2048, %s276, [#allocation3], 64, 64, 4
        $region16: #{tpu_custom_call.1} parent=11 // pred_fallthru
          _
        // Predicated region
        $region17: #{tpu_custom_call.1} parent=11 // pred_check
          %p282 = pneg %p118
        $region18: #{tpu_custom_call.1} parent=11 // pred_check_branch
          %284 = sbr.rel (%p282) target = $region20
        $region19: #{tpu_custom_call.1} parent=11 // pred_region
          _
        $region20: #{tpu_custom_call.1} parent=11 // pred_fallthru
          _
        // Predicated region
        $region21: #{tpu_custom_call.1} parent=11 // pred_check
          %p285 = pneg %p139
        $region22: #{tpu_custom_call.1} parent=11 // pred_check_branch
          %287 = sbr.rel (%p285) target = $region24
        $region23: #{tpu_custom_call.1} parent=11 // pred_region
          _
        $region24: #{tpu_custom_call.1} parent=11 // pred_fallthru
          _
        // Predicated region
        $region25: #{tpu_custom_call.1} parent=11 // pred_check
          %p288 = pneg %p160
        $region26: #{tpu_custom_call.1} parent=11 // pred_check_branch
          %290 = sbr.rel (%p288) target = $region28
        $region27: #{tpu_custom_call.1} parent=11 // pred_region
          _
        $region28: #{tpu_custom_call.1} parent=11 // pred_fallthru
          _
        // Predicated region
        $region29: #{tpu_custom_call.1} parent=11 // pred_check
          %p291 = pneg %p181
        $region30: #{tpu_custom_call.1} parent=11 // pred_check_branch
          %293 = sbr.rel (%p291) target = $region32
        $region31: #{tpu_custom_call.1} parent=11 // pred_region
          %s295 = ssub.s32 2048, 2048
          %296 = vsyncadd [#allocation6], %s295
          %s297 = sshll.u32 [#allocation5], 4
          %s298 = int_to_ptr.vmem [resolvable:$true] %s297
          %303 = dma.hbm_to_vmem [thread:$0]  %s6, 2048, %s298, [#allocation6], 128, 128, 8
        $region32: #{tpu_custom_call.1} parent=11 // pred_fallthru
          _
        // Predicated region
        $region33: #{tpu_custom_call.1} parent=11 // pred_check
          %p304 = pneg %p202
        $region34: #{tpu_custom_call.1} parent=11 // pred_check_branch
          %306 = sbr.rel (%p304) target = $region36
        $region35: #{tpu_custom_call.1} parent=11 // pred_region
          _
        $region36: #{tpu_custom_call.1} parent=11 // pred_fallthru
          _
      $region12: #{tpu_custom_call.1} parent=5 // pred_fallthru
        _
      %p307 = scmp.lt.s32.totalorder %s24, 2
      // Predicated region
      $region37: #{tpu_custom_call.1} parent=5 // pred_check
        %p308 = pneg %p307
      $region38: #{tpu_custom_call.1} parent=5 // pred_check_branch
        %310 = sbr.rel (%p308) target = $region40
      $region39: #{tpu_custom_call.1} parent=5 // pred_region
        // Predicated region
        $region41: #{tpu_custom_call.1} parent=39 // pred_check
          %p311 = pneg %p44
        $region42: #{tpu_custom_call.1} parent=39 // pred_check_branch
          %313 = sbr.rel (%p311) target = $region44
        $region43: #{tpu_custom_call.1} parent=39 // pred_region
          %s314 = smul.u32 16, %s24
          %p315 = scmp.lt.s32.totalorder %s314, 31
          %s316 = scalar_select %p315, %s314, 31
          %s317 = smul.addr %s316, 2
          %s318 = smul.addr %s317, 4
          %s319 = scalar_lea.vmem %s0, %s318
          %s320 = smul.u32 16, %s24
        $region44: #{tpu_custom_call.1} parent=39 // pred_fallthru
          _
        // Predicated region
        $region45: #{tpu_custom_call.1} parent=39 // pred_check
          %p321 = pneg %p70
        $region46: #{tpu_custom_call.1} parent=39 // pred_check_branch
          %323 = sbr.rel (%p321) target = $region48
        $region47: #{tpu_custom_call.1} parent=39 // pred_region
          %s324 = smul.u32 16, %s24
          %p325 = scmp.lt.s32.totalorder %s324, 31
          %s326 = scalar_select %p325, %s324, 31
          %s327 = smul.addr %s326, 8
          %s328 = scalar_lea.vmem %s1, %s327
          %s329 = smul.u32 16, %s24
        $region48: #{tpu_custom_call.1} parent=39 // pred_fallthru
          _
      $region40: #{tpu_custom_call.1} parent=5 // pred_fallthru
        _
      %p330 = scmp.le.s32.totalorder 1, %s24
      %p331 = scmp.lt.s32.totalorder %s24, 3
      %p332 = pnand %p330, %p331
      %p333 = pneg %p332
      // Predicated region
      $region49: #{tpu_custom_call.1} parent=5 // pred_check
        _
      $region50: #{tpu_custom_call.1} parent=5 // pred_check_branch
        %335 = sbr.rel (%p332) target = $region52
      $region51: #{tpu_custom_call.1} parent=5 // pred_region
        %s336 = ssub.s32 %s24, 1
        // Predicated region
        $region53: #{tpu_custom_call.1} parent=51 // pred_check
          %p337 = pneg %p97
        $region54: #{tpu_custom_call.1} parent=51 // pred_check_branch
          %339 = sbr.rel (%p337) target = $region56
        $region55: #{tpu_custom_call.1} parent=51 // pred_region
          %340 = dma.done [#allocation3], 2048
        $region56: #{tpu_custom_call.1} parent=51 // pred_fallthru
          _
        // Predicated region
        $region57: #{tpu_custom_call.1} parent=51 // pred_check
          %p341 = pneg %p181
        $region58: #{tpu_custom_call.1} parent=51 // pred_check_branch
          %343 = sbr.rel (%p341) target = $region60
        $region59: #{tpu_custom_call.1} parent=51 // pred_region
          %344 = dma.done [#allocation6], 2048
        $region60: #{tpu_custom_call.1} parent=51 // pred_fallthru
          _
        %s345 = smul.u32 16, %s29
        %p346 = scmp.lt.s32.totalorder %s345, 31
        %s347 = scalar_select %p346, %s345, 31
        %s348 = smul.addr %s347, 2
        %s349 = smul.addr %s348, 4
        %s350 = scalar_lea.vmem %s0, %s349
        %p351 = pneg %p50
        %p352 = pneg %p47
        %s353 = smul.u32 16, %s29
        %p354 = scmp.lt.s32.totalorder %s353, 31
        %s355 = scalar_select %p354, %s353, 31
        %s356 = smul.addr %s355, 8
        %s357 = scalar_lea.vmem %s1, %s356
        %p358 = pneg %p76
        %p359 = pneg %p73
        %p360 = pneg %p97
        %p361 = pneg %p94
        %p362 = pneg %p118
        %p363 = pneg %p115
        %p364 = pneg %p139
        %p365 = pneg %p136
        %p366 = pneg %p160
        %p367 = pneg %p157
        %p368 = pneg %p181
        %p369 = pneg %p178
        %p370 = pneg %p202
        %p371 = pneg %p199
        %p372 = pneg %p228
        %p373 = pneg %p225
        %s374 = sand.u32 %s215, 1
        %s375 = scalar_lea.sflag [#allocation4], %s374
        %s376 = sand.u32 %s215, 1
        %s377 = smul.addr %s376, 256
        %s378 = scalar_lea.vmem [#allocation7], %s377
        %p379 = pneg %p254
        %p380 = pneg %p251
        %s381 = sand.u32 %s241, 1
        %s382 = scalar_lea.sflag [#allocation9], %s381
        %s383 = sand.u32 %s241, 1
        %s384 = smul.addr %s383, 128
        %s385 = scalar_lea.vmem [#allocation8], %s384
        %s386 = smul.u32 16, %s29
        %p387 = scmp.lt.s32.totalorder %s386, 31
        %s388 = scalar_select %p387, %s386, 31
        %s389 = smul.addr %s388, 2
        %s390 = smul.addr %s389, 4
        %s391 = scalar_lea.vmem %s0, %s390
        %s392 = smul.u32 16, %s29
        %s393 = smul.u32 16, %s29
        %p394 = scmp.lt.s32.totalorder %s393, 31
        %s395 = scalar_select %p394, %s393, 31
        %s396 = smul.addr %s395, 8
        %s397 = scalar_lea.vmem %s1, %s396
        %s398 = smul.u32 16, %s29
        %s399 = smul.u32 16, %s29
        %s400 = smul.u32 16, %s29
        %v402 = vld [vmem:[%s7] sm:$0xff]
        %v403 = vld [vmem:[%s7 + $0x8] sm:$0xff]
        %v404 = vld [vmem:[%s391] sm:$0xff]
        %v405 = vld [vmem:[%s391 + $0x8] sm:$0xff]
        %v406 = vld [vmem:[%s391 + $0x10] sm:$0xff]
        %v407 = vld [vmem:[%s391 + $0x18] sm:$0xff]
        %v408 = vld [vmem:[%s391 + $0x20] sm:$0xff]
        %v409 = vld [vmem:[%s391 + $0x28] sm:$0xff]
        %v410 = vld [vmem:[%s391 + $0x30] sm:$0xff]
        %v411 = vld [vmem:[%s391 + $0x38] sm:$0xff]
        %v412 = vld [vmem:[%s391 + $0x40] sm:$0xff]
        %v413 = vld [vmem:[%s391 + $0x48] sm:$0xff]
        %v414 = vld [vmem:[%s391 + $0x50] sm:$0xff]
        %v415 = vld [vmem:[%s391 + $0x58] sm:$0xff]
        %v416 = vld [vmem:[%s391 + $0x60] sm:$0xff]
        %v417 = vld [vmem:[%s391 + $0x68] sm:$0xff]
        %v418 = vld [vmem:[%s391 + $0x70] sm:$0xff]
        %v419 = vld [vmem:[%s391 + $0x78] sm:$0xff]
        %v420 = vld [vmem:[#allocation2] sm:$0xf]
        %v421 = vld [vmem:[#allocation2 + $0x4] sm:$0xf]
        %v422 = vld [vmem:[#allocation2 + $0x8] sm:$0xf]
        %v423 = vld [vmem:[#allocation2 + $0xc] sm:$0xf]
        %v424 = vld [vmem:[#allocation2 + $0x10] sm:$0xf]
        %v425 = vld [vmem:[#allocation2 + $0x14] sm:$0xf]
        %v426 = vld [vmem:[#allocation2 + $0x18] sm:$0xf]
        %v427 = vld [vmem:[#allocation2 + $0x1c] sm:$0xf]
        %v428 = vld [vmem:[#allocation2 + $0x20] sm:$0xf]
        %v429 = vld [vmem:[#allocation2 + $0x24] sm:$0xf]
        %v430 = vld [vmem:[#allocation2 + $0x28] sm:$0xf]
        %v431 = vld [vmem:[#allocation2 + $0x2c] sm:$0xf]
        %v432 = vld [vmem:[#allocation2 + $0x30] sm:$0xf]
        %v433 = vld [vmem:[#allocation2 + $0x34] sm:$0xf]
        %v434 = vld [vmem:[#allocation2 + $0x38] sm:$0xf]
        %v435 = vld [vmem:[#allocation2 + $0x3c] sm:$0xf]
        %v436 = vld [vmem:[#allocation2 + $0x40] sm:$0xf]
        %v437 = vld [vmem:[#allocation2 + $0x44] sm:$0xf]
        %v438 = vld [vmem:[#allocation2 + $0x48] sm:$0xf]
        %v439 = vld [vmem:[#allocation2 + $0x4c] sm:$0xf]
        %v440 = vld [vmem:[#allocation2 + $0x50] sm:$0xf]
        %v441 = vld [vmem:[#allocation2 + $0x54] sm:$0xf]
        %v442 = vld [vmem:[#allocation2 + $0x58] sm:$0xf]
        %v443 = vld [vmem:[#allocation2 + $0x5c] sm:$0xf]
        %v444 = vld [vmem:[#allocation2 + $0x60] sm:$0xf]
        %v445 = vld [vmem:[#allocation2 + $0x64] sm:$0xf]
        %v446 = vld [vmem:[#allocation2 + $0x68] sm:$0xf]
        %v447 = vld [vmem:[#allocation2 + $0x6c] sm:$0xf]
        %v448 = vld [vmem:[#allocation2 + $0x70] sm:$0xf]
        %v449 = vld [vmem:[#allocation2 + $0x74] sm:$0xf]
        %v450 = vld [vmem:[#allocation2 + $0x78] sm:$0xf]
        %v451 = vld [vmem:[#allocation2 + $0x7c] sm:$0xf]
        %v452 = vlaneseq
        %v453 = vshrl.u32 %v452, 7
        %v454 = vsub.s32 0, %v453
        %v455 = vrot.slane %v402, %v454
        %v472 = vunpack.c.l.b16 %v404
        %v473 = vunpack.c.h.b16 %v404
        %v474 = vunpack.c.l.b16 %v405
        %v475 = vunpack.c.h.b16 %v405
        %v476 = vunpack.c.l.b16 %v406
        %v477 = vunpack.c.h.b16 %v406
        %v478 = vunpack.c.l.b16 %v407
        %v479 = vunpack.c.h.b16 %v407
        %v480 = vunpack.c.l.b16 %v408
        %v481 = vunpack.c.h.b16 %v408
        %v482 = vunpack.c.l.b16 %v409
        %v483 = vunpack.c.h.b16 %v409
        %v484 = vunpack.c.l.b16 %v410
        %v485 = vunpack.c.h.b16 %v410
        %v486 = vunpack.c.l.b16 %v411
        %v487 = vunpack.c.h.b16 %v411
        %v488 = vunpack.c.l.b16 %v412
        %v489 = vunpack.c.h.b16 %v412
        %v490 = vunpack.c.l.b16 %v413
        %v491 = vunpack.c.h.b16 %v413
        %v492 = vunpack.c.l.b16 %v414
        %v493 = vunpack.c.h.b16 %v414
        %v494 = vunpack.c.l.b16 %v415
        %v495 = vunpack.c.h.b16 %v415
        %v496 = vunpack.c.l.b16 %v416
        %v497 = vunpack.c.h.b16 %v416
        %v498 = vunpack.c.l.b16 %v417
        %v499 = vunpack.c.h.b16 %v417
        %v500 = vunpack.c.l.b16 %v418
        %v501 = vunpack.c.h.b16 %v418
        %v502 = vunpack.c.l.b16 %v419
        %v503 = vunpack.c.h.b16 %v419
        %v504 = vpack.c.b16 %v474, %v472
        %v505 = vpack.c.b16 %v475, %v473
        %v506 = vpack.c.b16 %v478, %v476
        %v507 = vpack.c.b16 %v479, %v477
        %v508 = vpack.c.b16 %v482, %v480
        %v509 = vpack.c.b16 %v483, %v481
        %v510 = vpack.c.b16 %v486, %v484
        %v511 = vpack.c.b16 %v487, %v485
        %v512 = vpack.c.b16 %v490, %v488
        %v513 = vpack.c.b16 %v491, %v489
        %v514 = vpack.c.b16 %v494, %v492
        %v515 = vpack.c.b16 %v495, %v493
        %v516 = vpack.c.b16 %v498, %v496
        %v517 = vpack.c.b16 %v499, %v497
        %v518 = vpack.c.b16 %v502, %v500
        %v519 = vpack.c.b16 %v503, %v501
        %v568 = vunpack.c.l.b16 %v420
        %v569 = vunpack.c.l.b16 %v421
        %v570 = vunpack.c.l.b16 %v422
        %v571 = vunpack.c.l.b16 %v423
        %v572 = vunpack.c.l.b16 %v424
        %v573 = vunpack.c.l.b16 %v425
        %v574 = vunpack.c.l.b16 %v426
        %v575 = vunpack.c.l.b16 %v427
        %v576 = vunpack.c.l.b16 %v428
        %v577 = vunpack.c.l.b16 %v429
        %v578 = vunpack.c.l.b16 %v430
        %v579 = vunpack.c.l.b16 %v431
        %v580 = vunpack.c.l.b16 %v432
        %v581 = vunpack.c.l.b16 %v433
        %v582 = vunpack.c.l.b16 %v434
        %v583 = vunpack.c.l.b16 %v435
        %v584 = vunpack.c.l.b16 %v436
        %v585 = vunpack.c.l.b16 %v437
        %v586 = vunpack.c.l.b16 %v438
        %v587 = vunpack.c.l.b16 %v439
        %v588 = vunpack.c.l.b16 %v440
        %v589 = vunpack.c.l.b16 %v441
        %v590 = vunpack.c.l.b16 %v442
        %v591 = vunpack.c.l.b16 %v443
        %v592 = vunpack.c.l.b16 %v444
        %v593 = vunpack.c.l.b16 %v445
        %v594 = vunpack.c.l.b16 %v446
        %v595 = vunpack.c.l.b16 %v447
        %v596 = vunpack.c.l.b16 %v448
        %v597 = vunpack.c.l.b16 %v449
        %v598 = vunpack.c.l.b16 %v450
        %v599 = vunpack.c.l.b16 %v451
        %v600 = vpack.c.b16 %v569, %v568
        %v601 = vpack.c.b16 %v571, %v570
        %v602 = vpack.c.b16 %v573, %v572
        %v603 = vpack.c.b16 %v575, %v574
        %v604 = vpack.c.b16 %v577, %v576
        %v605 = vpack.c.b16 %v579, %v578
        %v606 = vpack.c.b16 %v581, %v580
        %v607 = vpack.c.b16 %v583, %v582
        %v608 = vpack.c.b16 %v585, %v584
        %v609 = vpack.c.b16 %v587, %v586
        %v610 = vpack.c.b16 %v589, %v588
        %v611 = vpack.c.b16 %v591, %v590
        %v612 = vpack.c.b16 %v593, %v592
        %v613 = vpack.c.b16 %v595, %v594
        %v614 = vpack.c.b16 %v597, %v596
        %v615 = vpack.c.b16 %v599, %v598
        %632 = vmatprep.subr.bf16.mxu0 0
        %633 = vmatpush1.bf16.msra.mxu0 %v600
        %634 = vmatprep.subr.bf16.mxu0 0
        %635 = vmatpush1.bf16.msra.mxu0 %v601
        %636 = vmatprep.subr.bf16.mxu0 0
        %637 = vmatpush1.bf16.msra.mxu0 %v602
        %638 = vmatprep.subr.bf16.mxu0 0
        %639 = vmatpush1.bf16.msra.mxu0 %v603
        %640 = vmatprep.subr.bf16.mxu0 0
        %641 = vmatpush1.bf16.msra.mxu0 %v604
        %642 = vmatprep.subr.bf16.mxu0 0
        %643 = vmatpush1.bf16.msra.mxu0 %v605
        %644 = vmatprep.subr.bf16.mxu0 0
        %645 = vmatpush1.bf16.msra.mxu0 %v606
        %646 = vmatprep.subr.bf16.mxu0 0
        %647 = vmatpush1.bf16.msra.mxu0 %v607
        %648 = vmatprep.subr.bf16.mxu0 0
        %649 = vmatpush1.bf16.msra.mxu0 %v608
        %650 = vmatprep.subr.bf16.mxu0 0
        %651 = vmatpush1.bf16.msra.mxu0 %v609
        %652 = vmatprep.subr.bf16.mxu0 0
        %653 = vmatpush1.bf16.msra.mxu0 %v610
        %654 = vmatprep.subr.bf16.mxu0 0
        %655 = vmatpush1.bf16.msra.mxu0 %v611
        %656 = vmatprep.subr.bf16.mxu0 0
        %657 = vmatpush1.bf16.msra.mxu0 %v612
        %658 = vmatprep.subr.bf16.mxu0 0
        %659 = vmatpush1.bf16.msra.mxu0 %v613
        %660 = vmatprep.subr.bf16.mxu0 0
        %661 = vmatpush1.bf16.msra.mxu0 %v614
        %662 = vmatprep.subr.bf16.mxu0 0
        %663 = vmatpush1.bf16.msra.mxu0 %v615
        %664 = vmatprep.mubr.bf16.mxu0 %v505
        %665 = vmatmul.mubr.bf16.gmra.mrb[0].mxu0 %v504
        %v666 = vpop.f32.mrb[0].mxu0
        %v667 = vadd.f32 %v455, %v666
        %v668 = vpop.f32.mrb[0].mxu0
        %v669 = vpop.f32.mrb[0].mxu0
        %v670 = vadd.f32 %v455, %v669
        %v671 = vpop.f32.mrb[0].mxu0
        %672 = vmatprep.mubr.bf16.mxu0 %v507
        %673 = vmatmul.mubr.bf16.gmra.mrb[0].mxu0 %v506
        %v674 = vpop.f32.mrb[0].mxu0
        %v675 = vadd.f32 %v455, %v674
        %v676 = vpop.f32.mrb[0].mxu0
        %v677 = vpop.f32.mrb[0].mxu0
        %v678 = vadd.f32 %v455, %v677
        %v679 = vpop.f32.mrb[0].mxu0
        %680 = vmatprep.mubr.bf16.mxu0 %v509
        %681 = vmatmul.mubr.bf16.gmra.mrb[0].mxu0 %v508
        %v682 = vpop.f32.mrb[0].mxu0
        %v683 = vadd.f32 %v455, %v682
        %v684 = vpop.f32.mrb[0].mxu0
        %v685 = vpop.f32.mrb[0].mxu0
        %v686 = vadd.f32 %v455, %v685
        %v687 = vpop.f32.mrb[0].mxu0
        %688 = vmatprep.mubr.bf16.mxu0 %v511
        %689 = vmatmul.mubr.bf16.gmra.mrb[0].mxu0 %v510
        %v690 = vpop.f32.mrb[0].mxu0
        %v691 = vadd.f32 %v455, %v690
        %v692 = vpop.f32.mrb[0].mxu0
        %v693 = vpop.f32.mrb[0].mxu0
        %v694 = vadd.f32 %v455, %v693
        %v695 = vpop.f32.mrb[0].mxu0
        %696 = vmatprep.mubr.bf16.mxu0 %v513
        %697 = vmatmul.mubr.bf16.gmra.mrb[0].mxu0 %v512
        %v698 = vpop.f32.mrb[0].mxu0
        %v699 = vadd.f32 %v455, %v698
        %v700 = vpop.f32.mrb[0].mxu0
        %v701 = vpop.f32.mrb[0].mxu0
        %v702 = vadd.f32 %v455, %v701
        %v703 = vpop.f32.mrb[0].mxu0
        %704 = vmatprep.mubr.bf16.mxu0 %v515
        %705 = vmatmul.mubr.bf16.gmra.mrb[0].mxu0 %v514
        %v706 = vpop.f32.mrb[0].mxu0
        %v707 = vadd.f32 %v455, %v706
        %v708 = vpop.f32.mrb[0].mxu0
        %v709 = vpop.f32.mrb[0].mxu0
        %v710 = vadd.f32 %v455, %v709
        %v711 = vpop.f32.mrb[0].mxu0
        %712 = vmatprep.mubr.bf16.mxu0 %v517
        %713 = vmatmul.mubr.bf16.gmra.mrb[0].mxu0 %v516
        %v714 = vpop.f32.mrb[0].mxu0
        %v715 = vadd.f32 %v455, %v714
        %v716 = vpop.f32.mrb[0].mxu0
        %v717 = vpop.f32.mrb[0].mxu0
        %v718 = vadd.f32 %v455, %v717
        %v719 = vpop.f32.mrb[0].mxu0
        %720 = vmatprep.mubr.bf16.mxu0 %v519
        %721 = vmatmul.mubr.bf16.gmra.mrb[0].mxu0 %v518
        %v722 = vpop.f32.mrb[0].mxu0
        %v723 = vadd.f32 %v455, %v722
        %v724 = vpop.f32.mrb[0].mxu0
        %v725 = vpop.f32.mrb[0].mxu0
        %v726 = vadd.f32 %v455, %v725
        %v727 = vpop.f32.mrb[0].mxu0
        %728 = vdwg.mxu0
        %v729 = vmax.f32 %v667, 0.0
        %v730 = vmax.f32 %v670, 0.0
        %v731 = vmax.f32 %v675, 0.0
        %v732 = vmax.f32 %v678, 0.0
        %v733 = vmax.f32 %v683, 0.0
        %v734 = vmax.f32 %v686, 0.0
        %v735 = vmax.f32 %v691, 0.0
        %v736 = vmax.f32 %v694, 0.0
        %v737 = vmax.f32 %v699, 0.0
        %v738 = vmax.f32 %v702, 0.0
        %v739 = vmax.f32 %v707, 0.0
        %v740 = vmax.f32 %v710, 0.0
        %v741 = vmax.f32 %v715, 0.0
        %v742 = vmax.f32 %v718, 0.0
        %v743 = vmax.f32 %v723, 0.0
        %v744 = vmax.f32 %v726, 0.0
        %v745 = vpack.c.bf16 %v730, %v729
        %v746 = vpack.c.bf16 %v732, %v731
        %v747 = vpack.c.bf16 %v734, %v733
        %v748 = vpack.c.bf16 %v736, %v735
        %v749 = vpack.c.bf16 %v738, %v737
        %v750 = vpack.c.bf16 %v740, %v739
        %v751 = vpack.c.bf16 %v742, %v741
        %v752 = vpack.c.bf16 %v744, %v743
        %v753 = vld [vmem:[%s3] sm:$0xf]
        %v754 = vld [vmem:[%s3 + $0x4] sm:$0xf]
        %v755 = vld [vmem:[%s3 + $0x8] sm:$0xf]
        %v756 = vld [vmem:[%s3 + $0xc] sm:$0xf]
        %v757 = vld [vmem:[%s3 + $0x10] sm:$0xf]
        %v758 = vld [vmem:[%s3 + $0x14] sm:$0xf]
        %v759 = vld [vmem:[%s3 + $0x18] sm:$0xf]
        %v760 = vld [vmem:[%s3 + $0x1c] sm:$0xf]
        %v761 = vld [vmem:[%s3 + $0x20] sm:$0xf]
        %v762 = vld [vmem:[%s3 + $0x24] sm:$0xf]
        %v763 = vld [vmem:[%s3 + $0x28] sm:$0xf]
        %v764 = vld [vmem:[%s3 + $0x2c] sm:$0xf]
        %v765 = vld [vmem:[%s3 + $0x30] sm:$0xf]
        %v766 = vld [vmem:[%s3 + $0x34] sm:$0xf]
        %v767 = vld [vmem:[%s3 + $0x38] sm:$0xf]
        %v768 = vld [vmem:[%s3 + $0x3c] sm:$0xf]
        %v769 = vlaneseq
        %v770 = vshrl.u32 %v769, 7
        %v771 = vsub.s32 1, %v770
        %v772 = vrot.slane %v402, %v771
        %v789 = vunpack.c.l.b16 %v753
        %v790 = vunpack.c.l.b16 %v754
        %v791 = vunpack.c.l.b16 %v755
        %v792 = vunpack.c.l.b16 %v756
        %v793 = vunpack.c.l.b16 %v757
        %v794 = vunpack.c.l.b16 %v758
        %v795 = vunpack.c.l.b16 %v759
        %v796 = vunpack.c.l.b16 %v760
        %v797 = vunpack.c.l.b16 %v761
        %v798 = vunpack.c.l.b16 %v762
        %v799 = vunpack.c.l.b16 %v763
        %v800 = vunpack.c.l.b16 %v764
        %v801 = vunpack.c.l.b16 %v765
        %v802 = vunpack.c.l.b16 %v766
        %v803 = vunpack.c.l.b16 %v767
        %v804 = vunpack.c.l.b16 %v768
        %v805 = vpack.c.b16 %v790, %v789
        %v806 = vpack.c.b16 %v792, %v791
        %v807 = vpack.c.b16 %v794, %v793
        %v808 = vpack.c.b16 %v796, %v795
        %v809 = vpack.c.b16 %v798, %v797
        %v810 = vpack.c.b16 %v800, %v799
        %v811 = vpack.c.b16 %v802, %v801
        %v812 = vpack.c.b16 %v804, %v803
        %821 = vmatprep.subr.bf16.mxu0 0
        %822 = vmatpush1.bf16.msra.mxu0 %v805
        %823 = vmatprep.subr.bf16.mxu0 0
        %824 = vmatpush1.bf16.msra.mxu0 %v806
        %825 = vmatprep.subr.bf16.mxu0 0
        %826 = vmatpush1.bf16.msra.mxu0 %v807
        %827 = vmatprep.subr.bf16.mxu0 0
        %828 = vmatpush1.bf16.msra.mxu0 %v808
        %829 = vmatprep.subr.bf16.mxu0 0
        %830 = vmatpush1.bf16.msra.mxu0 %v809
        %831 = vmatprep.subr.bf16.mxu0 0
        %832 = vmatpush1.bf16.msra.mxu0 %v810
        %833 = vmatprep.subr.bf16.mxu0 0
        %834 = vmatpush1.bf16.msra.mxu0 %v811
        %835 = vmatprep.subr.bf16.mxu0 0
        %836 = vmatpush1.bf16.msra.mxu0 %v812
        %837 = vmatprep.subr.bf16.mxu0 0
        %838 = vmatpush1.bf16.msra.mxu0 0
        %839 = vmatprep.subr.bf16.mxu0 0
        %840 = vmatpush1.bf16.msra.mxu0 0
        %841 = vmatprep.subr.bf16.mxu0 0
        %842 = vmatpush1.bf16.msra.mxu0 0
        %843 = vmatprep.subr.bf16.mxu0 0
        %844 = vmatpush1.bf16.msra.mxu0 0
        %845 = vmatprep.subr.bf16.mxu0 0
        %846 = vmatpush1.bf16.msra.mxu0 0
        %847 = vmatprep.subr.bf16.mxu0 0
        %848 = vmatpush1.bf16.msra.mxu0 0
        %849 = vmatprep.subr.bf16.mxu0 0
        %850 = vmatpush1.bf16.msra.mxu0 0
        %851 = vmatprep.subr.bf16.mxu0 0
        %852 = vmatpush1.bf16.msra.mxu0 0
        %853 = vmatprep.mubr.bf16.mxu0 0
        %854 = vmatmul.mubr.bf16.gmra.mrb[0].mxu0 %v745
        %v855 = vpop.f32.mrb[0].mxu0
        %v856 = vadd.f32 %v772, %v855
        %v857 = vpop.f32.mrb[0].mxu0
        %v858 = vpop.f32.mrb[0].mxu0
        %v859 = vadd.f32 %v772, %v858
        %v860 = vpop.f32.mrb[0].mxu0
        %861 = vmatprep.mubr.bf16.mxu0 0
        %862 = vmatmul.mubr.bf16.gmra.mrb[0].mxu0 %v746
        %v863 = vpop.f32.mrb[0].mxu0
        %v864 = vadd.f32 %v772, %v863
        %v865 = vpop.f32.mrb[0].mxu0
        %v866 = vpop.f32.mrb[0].mxu0
        %v867 = vadd.f32 %v772, %v866
        %v868 = vpop.f32.mrb[0].mxu0
        %869 = vmatprep.mubr.bf16.mxu0 0
        %870 = vmatmul.mubr.bf16.gmra.mrb[0].mxu0 %v747
        %v871 = vpop.f32.mrb[0].mxu0
        %v872 = vadd.f32 %v772, %v871
        %v873 = vpop.f32.mrb[0].mxu0
        %v874 = vpop.f32.mrb[0].mxu0
        %v875 = vadd.f32 %v772, %v874
        %v876 = vpop.f32.mrb[0].mxu0
        %877 = vmatprep.mubr.bf16.mxu0 0
        %878 = vmatmul.mubr.bf16.gmra.mrb[0].mxu0 %v748
        %v879 = vpop.f32.mrb[0].mxu0
        %v880 = vadd.f32 %v772, %v879
        %v881 = vpop.f32.mrb[0].mxu0
        %v882 = vpop.f32.mrb[0].mxu0
        %v883 = vadd.f32 %v772, %v882
        %v884 = vpop.f32.mrb[0].mxu0
        %885 = vmatprep.mubr.bf16.mxu0 0
        %886 = vmatmul.mubr.bf16.gmra.mrb[0].mxu0 %v749
        %v887 = vpop.f32.mrb[0].mxu0
        %v888 = vadd.f32 %v772, %v887
        %v889 = vpop.f32.mrb[0].mxu0
        %v890 = vpop.f32.mrb[0].mxu0
        %v891 = vadd.f32 %v772, %v890
        %v892 = vpop.f32.mrb[0].mxu0
        %893 = vmatprep.mubr.bf16.mxu0 0
        %894 = vmatmul.mubr.bf16.gmra.mrb[0].mxu0 %v750
        %v895 = vpop.f32.mrb[0].mxu0
        %v896 = vadd.f32 %v772, %v895
        %v897 = vpop.f32.mrb[0].mxu0
        %v898 = vpop.f32.mrb[0].mxu0
        %v899 = vadd.f32 %v772, %v898
        %v900 = vpop.f32.mrb[0].mxu0
        %901 = vmatprep.mubr.bf16.mxu0 0
        %902 = vmatmul.mubr.bf16.gmra.mrb[0].mxu0 %v751
        %v903 = vpop.f32.mrb[0].mxu0
        %v904 = vadd.f32 %v772, %v903
        %v905 = vpop.f32.mrb[0].mxu0
        %v906 = vpop.f32.mrb[0].mxu0
        %v907 = vadd.f32 %v772, %v906
        %v908 = vpop.f32.mrb[0].mxu0
        %909 = vmatprep.mubr.bf16.mxu0 0
        %910 = vmatmul.mubr.bf16.gmra.mrb[0].mxu0 %v752
        %v911 = vpop.f32.mrb[0].mxu0
        %v912 = vadd.f32 %v772, %v911
        %v913 = vpop.f32.mrb[0].mxu0
        %v914 = vpop.f32.mrb[0].mxu0
        %v915 = vadd.f32 %v772, %v914
        %v916 = vpop.f32.mrb[0].mxu0
        %917 = vdwg.mxu0
        %v918 = vmax.f32 %v856, 0.0
        %v919 = vmax.f32 %v859, 0.0
        %v920 = vmax.f32 %v864, 0.0
        %v921 = vmax.f32 %v867, 0.0
        %v922 = vmax.f32 %v872, 0.0
        %v923 = vmax.f32 %v875, 0.0
        %v924 = vmax.f32 %v880, 0.0
        %v925 = vmax.f32 %v883, 0.0
        %v926 = vmax.f32 %v888, 0.0
        %v927 = vmax.f32 %v891, 0.0
        %v928 = vmax.f32 %v896, 0.0
        %v929 = vmax.f32 %v899, 0.0
        %v930 = vmax.f32 %v904, 0.0
        %v931 = vmax.f32 %v907, 0.0
        %v932 = vmax.f32 %v912, 0.0
        %v933 = vmax.f32 %v915, 0.0
        %v934 = vpack.c.bf16 %v919, %v918
        %v935 = vpack.c.bf16 %v921, %v920
        %v936 = vpack.c.bf16 %v923, %v922
        %v937 = vpack.c.bf16 %v925, %v924
        %v938 = vpack.c.bf16 %v927, %v926
        %v939 = vpack.c.bf16 %v929, %v928
        %v940 = vpack.c.bf16 %v931, %v930
        %v941 = vpack.c.bf16 %v933, %v932
        %v942 = vld [vmem:[%s4] sm:$0xf]
        %v943 = vld [vmem:[%s4 + $0x4] sm:$0xf]
        %v944 = vld [vmem:[%s4 + $0x8] sm:$0xf]
        %v945 = vld [vmem:[%s4 + $0xc] sm:$0xf]
        %v946 = vld [vmem:[%s4 + $0x10] sm:$0xf]
        %v947 = vld [vmem:[%s4 + $0x14] sm:$0xf]
        %v948 = vld [vmem:[%s4 + $0x18] sm:$0xf]
        %v949 = vld [vmem:[%s4 + $0x1c] sm:$0xf]
        %v950 = vlaneseq
        %v951 = vshrl.u32 %v950, 7
        %v952 = vsub.s32 2, %v951
        %v953 = vrot.slane %v402, %v952
        %v962 = vunpack.c.l.b16 %v942
        %v963 = vunpack.c.l.b16 %v943
        %v964 = vunpack.c.l.b16 %v944
        %v965 = vunpack.c.l.b16 %v945
        %v966 = vunpack.c.l.b16 %v946
        %v967 = vunpack.c.l.b16 %v947
        %v968 = vunpack.c.l.b16 %v948
        %v969 = vunpack.c.l.b16 %v949
        %v970 = vpack.c.b16 %v963, %v962
        %v971 = vpack.c.b16 %v965, %v964
        %v972 = vpack.c.b16 %v967, %v966
        %v973 = vpack.c.b16 %v969, %v968
        %vm978 = vcmask 523264
        %v980 = vsel %vm978, %v934, 0
        %v983 = vsel %vm978, %v935, 0
        %v986 = vsel %vm978, %v936, 0
        %v989 = vsel %vm978, %v937, 0
        %v992 = vsel %vm978, %v938, 0
        %v995 = vsel %vm978, %v939, 0
        %v998 = vsel %vm978, %v940, 0
        %v1001 = vsel %vm978, %v941, 0
        %1003 = vmatprep.subr.bf16.mxu0 0
        %1004 = vmatpush1.bf16.msra.mxu0 %v970
        %1005 = vmatprep.subr.bf16.mxu0 0
        %1006 = vmatpush1.bf16.msra.mxu0 %v971
        %1007 = vmatprep.subr.bf16.mxu0 0
        %1008 = vmatpush1.bf16.msra.mxu0 %v972
        %1009 = vmatprep.subr.bf16.mxu0 0
        %1010 = vmatpush1.bf16.msra.mxu0 %v973
        %1011 = vmatprep.subr.bf16.mxu0 0
        %1012 = vmatpush1.bf16.msra.mxu0 0
        %1013 = vmatprep.subr.bf16.mxu0 0
        %1014 = vmatpush1.bf16.msra.mxu0 0
        %1015 = vmatprep.subr.bf16.mxu0 0
        %1016 = vmatpush1.bf16.msra.mxu0 0
        %1017 = vmatprep.subr.bf16.mxu0 0
        %1018 = vmatpush1.bf16.msra.mxu0 0
        %1019 = vmatprep.subr.bf16.mxu0 0
        %1020 = vmatpush1.bf16.msra.mxu0 0
        %1021 = vmatprep.subr.bf16.mxu0 0
        %1022 = vmatpush1.bf16.msra.mxu0 0
        %1023 = vmatprep.subr.bf16.mxu0 0
        %1024 = vmatpush1.bf16.msra.mxu0 0
        %1025 = vmatprep.subr.bf16.mxu0 0
        %1026 = vmatpush1.bf16.msra.mxu0 0
        %1027 = vmatprep.subr.bf16.mxu0 0
        %1028 = vmatpush1.bf16.msra.mxu0 0
        %1029 = vmatprep.subr.bf16.mxu0 0
        %1030 = vmatpush1.bf16.msra.mxu0 0
        %1031 = vmatprep.subr.bf16.mxu0 0
        %1032 = vmatpush1.bf16.msra.mxu0 0
        %1033 = vmatprep.subr.bf16.mxu0 0
        %1034 = vmatpush1.bf16.msra.mxu0 0
        %1035 = vmatprep.mubr.bf16.mxu0 0
        %1036 = vmatmul.mubr.bf16.gmra.mrb[0].mxu0 %v980
        %v1037 = vpop.f32.mrb[0].mxu0
        %v1038 = vadd.f32 %v953, %v1037
        %v1039 = vpop.f32.mrb[0].mxu0
        %v1040 = vpop.f32.mrb[0].mxu0
        %v1041 = vadd.f32 %v953, %v1040
        %v1042 = vpop.f32.mrb[0].mxu0
        %1043 = vmatprep.mubr.bf16.mxu0 0
        %1044 = vmatmul.mubr.bf16.gmra.mrb[0].mxu0 %v983
        %v1045 = vpop.f32.mrb[0].mxu0
        %v1046 = vadd.f32 %v953, %v1045
        %v1047 = vpop.f32.mrb[0].mxu0
        %v1048 = vpop.f32.mrb[0].mxu0
        %v1049 = vadd.f32 %v953, %v1048
        %v1050 = vpop.f32.mrb[0].mxu0
        %1051 = vmatprep.mubr.bf16.mxu0 0
        %1052 = vmatmul.mubr.bf16.gmra.mrb[0].mxu0 %v986
        %v1053 = vpop.f32.mrb[0].mxu0
        %v1054 = vadd.f32 %v953, %v1053
        %v1055 = vpop.f32.mrb[0].mxu0
        %v1056 = vpop.f32.mrb[0].mxu0
        %v1057 = vadd.f32 %v953, %v1056
        %v1058 = vpop.f32.mrb[0].mxu0
        %1059 = vmatprep.mubr.bf16.mxu0 0
        %1060 = vmatmul.mubr.bf16.gmra.mrb[0].mxu0 %v989
        %v1061 = vpop.f32.mrb[0].mxu0
        %v1062 = vadd.f32 %v953, %v1061
        %v1063 = vpop.f32.mrb[0].mxu0
        %v1064 = vpop.f32.mrb[0].mxu0
        %v1065 = vadd.f32 %v953, %v1064
        %v1066 = vpop.f32.mrb[0].mxu0
        %1067 = vmatprep.mubr.bf16.mxu0 0
        %1068 = vmatmul.mubr.bf16.gmra.mrb[0].mxu0 %v992
        %v1069 = vpop.f32.mrb[0].mxu0
        %v1070 = vadd.f32 %v953, %v1069
        %v1071 = vpop.f32.mrb[0].mxu0
        %v1072 = vpop.f32.mrb[0].mxu0
        %v1073 = vadd.f32 %v953, %v1072
        %v1074 = vpop.f32.mrb[0].mxu0
        %1075 = vmatprep.mubr.bf16.mxu0 0
        %1076 = vmatmul.mubr.bf16.gmra.mrb[0].mxu0 %v995
        %v1077 = vpop.f32.mrb[0].mxu0
        %v1078 = vadd.f32 %v953, %v1077
        %v1079 = vpop.f32.mrb[0].mxu0
        %v1080 = vpop.f32.mrb[0].mxu0
        %v1081 = vadd.f32 %v953, %v1080
        %v1082 = vpop.f32.mrb[0].mxu0
        %1083 = vmatprep.mubr.bf16.mxu0 0
        %1084 = vmatmul.mubr.bf16.gmra.mrb[0].mxu0 %v998
        %v1085 = vpop.f32.mrb[0].mxu0
        %v1086 = vadd.f32 %v953, %v1085
        %v1087 = vpop.f32.mrb[0].mxu0
        %v1088 = vpop.f32.mrb[0].mxu0
        %v1089 = vadd.f32 %v953, %v1088
        %v1090 = vpop.f32.mrb[0].mxu0
        %1091 = vmatprep.mubr.bf16.mxu0 0
        %1092 = vmatmul.mubr.bf16.gmra.mrb[0].mxu0 %v1001
        %v1093 = vpop.f32.mrb[0].mxu0
        %v1094 = vadd.f32 %v953, %v1093
        %v1095 = vpop.f32.mrb[0].mxu0
        %v1096 = vpop.f32.mrb[0].mxu0
        %v1097 = vadd.f32 %v953, %v1096
        %v1098 = vpop.f32.mrb[0].mxu0
        %1099 = vdwg.mxu0
        %v1100 = vld [vmem:[%s397] sm:$0xff]
        %v1101 = vld [vmem:[%s397 + $0x8] sm:$0xff]
        %v1102 = vld [vmem:[%s397 + $0x10] sm:$0xff]
        %v1103 = vld [vmem:[%s397 + $0x18] sm:$0xff]
        %v1104 = vld [vmem:[%s397 + $0x20] sm:$0xff]
        %v1105 = vld [vmem:[%s397 + $0x28] sm:$0xff]
        %v1106 = vld [vmem:[%s397 + $0x30] sm:$0xff]
        %v1107 = vld [vmem:[%s397 + $0x38] sm:$0xff]
        %v1108 = vld [vmem:[%s397 + $0x40] sm:$0xff]
        %v1109 = vld [vmem:[%s397 + $0x48] sm:$0xff]
        %v1110 = vld [vmem:[%s397 + $0x50] sm:$0xff]
        %v1111 = vld [vmem:[%s397 + $0x58] sm:$0xff]
        %v1112 = vld [vmem:[%s397 + $0x60] sm:$0xff]
        %v1113 = vld [vmem:[%s397 + $0x68] sm:$0xff]
        %v1114 = vld [vmem:[%s397 + $0x70] sm:$0xff]
        %v1115 = vld [vmem:[%s397 + $0x78] sm:$0xff]
        %v1116 = vmul.f32 %v1038, 0.5
        %v1117 = vmul.f32 %v1041, 0.5
        %v1118 = vmul.f32 %v1046, 0.5
        %v1119 = vmul.f32 %v1049, 0.5
        %v1120 = vmul.f32 %v1054, 0.5
        %v1121 = vmul.f32 %v1057, 0.5
        %v1122 = vmul.f32 %v1062, 0.5
        %v1123 = vmul.f32 %v1065, 0.5
        %v1124 = vmul.f32 %v1070, 0.5
        %v1125 = vmul.f32 %v1073, 0.5
        %v1126 = vmul.f32 %v1078, 0.5
        %v1127 = vmul.f32 %v1081, 0.5
        %v1128 = vmul.f32 %v1086, 0.5
        %v1129 = vmul.f32 %v1089, 0.5
        %v1130 = vmul.f32 %v1094, 0.5
        %v1131 = vmul.f32 %v1097, 0.5
        %v1132 = vmul.f32 %v1116, 1.442695
        %v1133 = vpow.pop %v1132
        %v1134 = vmul.f32 %v1117, 1.442695
        %v1135 = vpow.pop %v1134
        %v1136 = vmul.f32 %v1118, 1.442695
        %v1137 = vpow.pop %v1136
        %v1138 = vmul.f32 %v1119, 1.442695
        %v1139 = vpow.pop %v1138
        %v1140 = vmul.f32 %v1120, 1.442695
        %v1141 = vpow.pop %v1140
        %v1142 = vmul.f32 %v1121, 1.442695
        %v1143 = vpow.pop %v1142
        %v1144 = vmul.f32 %v1122, 1.442695
        %v1145 = vpow.pop %v1144
        %v1146 = vmul.f32 %v1123, 1.442695
        %v1147 = vpow.pop %v1146
        %v1148 = vmul.f32 %v1124, 1.442695
        %v1149 = vpow.pop %v1148
        %v1150 = vmul.f32 %v1125, 1.442695
        %v1151 = vpow.pop %v1150
        %v1152 = vmul.f32 %v1126, 1.442695
        %v1153 = vpow.pop %v1152
        %v1154 = vmul.f32 %v1127, 1.442695
        %v1155 = vpow.pop %v1154
        %v1156 = vmul.f32 %v1128, 1.442695
        %v1157 = vpow.pop %v1156
        %v1158 = vmul.f32 %v1129, 1.442695
        %v1159 = vpow.pop %v1158
        %v1160 = vmul.f32 %v1130, 1.442695
        %v1161 = vpow.pop %v1160
        %v1162 = vmul.f32 %v1131, 1.442695
        %v1163 = vpow.pop %v1162
        %1180 = vrot.lane.b32.xlu0 %v1133, 126
        %v1181 = vpop.permute.xlu0 %1180
        %1182 = vrot.lane.b32.xlu0 %v1135, 126
        %v1183 = vpop.permute.xlu0 %1182
        %1184 = vrot.lane.b32.xlu0 %v1137, 126
        %v1185 = vpop.permute.xlu0 %1184
        %1186 = vrot.lane.b32.xlu0 %v1139, 126
        %v1187 = vpop.permute.xlu0 %1186
        %1188 = vrot.lane.b32.xlu0 %v1141, 126
        %v1189 = vpop.permute.xlu0 %1188
        %1190 = vrot.lane.b32.xlu0 %v1143, 126
        %v1191 = vpop.permute.xlu0 %1190
        %1192 = vrot.lane.b32.xlu0 %v1145, 126
        %v1193 = vpop.permute.xlu0 %1192
        %1194 = vrot.lane.b32.xlu0 %v1147, 126
        %v1195 = vpop.permute.xlu0 %1194
        %1196 = vrot.lane.b32.xlu0 %v1149, 126
        %v1197 = vpop.permute.xlu0 %1196
        %1198 = vrot.lane.b32.xlu0 %v1151, 126
        %v1199 = vpop.permute.xlu0 %1198
        %1200 = vrot.lane.b32.xlu0 %v1153, 126
        %v1201 = vpop.permute.xlu0 %1200
        %1202 = vrot.lane.b32.xlu0 %v1155, 126
        %v1203 = vpop.permute.xlu0 %1202
        %1204 = vrot.lane.b32.xlu0 %v1157, 126
        %v1205 = vpop.permute.xlu0 %1204
        %1206 = vrot.lane.b32.xlu0 %v1159, 126
        %v1207 = vpop.permute.xlu0 %1206
        %1208 = vrot.lane.b32.xlu0 %v1161, 126
        %v1209 = vpop.permute.xlu0 %1208
        %1210 = vrot.lane.b32.xlu0 %v1163, 126
        %v1211 = vpop.permute.xlu0 %1210
        %v1228 = vmul.f32 %v1100, %v1181
        %v1229 = vmul.f32 %v1101, %v1183
        %v1230 = vmul.f32 %v1102, %v1185
        %v1231 = vmul.f32 %v1103, %v1187
        %v1232 = vmul.f32 %v1104, %v1189
        %v1233 = vmul.f32 %v1105, %v1191
        %v1234 = vmul.f32 %v1106, %v1193
        %v1235 = vmul.f32 %v1107, %v1195
        %v1236 = vmul.f32 %v1108, %v1197
        %v1237 = vmul.f32 %v1109, %v1199
        %v1238 = vmul.f32 %v1110, %v1201
        %v1239 = vmul.f32 %v1111, %v1203
        %v1240 = vmul.f32 %v1112, %v1205
        %v1241 = vmul.f32 %v1113, %v1207
        %v1242 = vmul.f32 %v1114, %v1209
        %v1243 = vmul.f32 %v1115, %v1211
        %v1244 = vadd.f32 %v1038, %v1228
        %v1245 = vadd.f32 %v1041, %v1229
        %v1246 = vadd.f32 %v1046, %v1230
        %v1247 = vadd.f32 %v1049, %v1231
        %v1248 = vadd.f32 %v1054, %v1232
        %v1249 = vadd.f32 %v1057, %v1233
        %v1250 = vadd.f32 %v1062, %v1234
        %v1251 = vadd.f32 %v1065, %v1235
        %v1252 = vadd.f32 %v1070, %v1236
        %v1253 = vadd.f32 %v1073, %v1237
        %v1254 = vadd.f32 %v1078, %v1238
        %v1255 = vadd.f32 %v1081, %v1239
        %v1256 = vadd.f32 %v1086, %v1240
        %v1257 = vadd.f32 %v1089, %v1241
        %v1258 = vadd.f32 %v1094, %v1242
        %v1259 = vadd.f32 %v1097, %v1243
        %1261 = vset.pattern.permute.xlu0 0
        %1262 = vperm.xlu0 %1261, %v1244
        %v1263 = vpop.permute.xlu0 %1262
        %1266 = vset.pattern.permute.xlu0 0
        %1267 = vperm.xlu0 %1266, %v1245
        %v1268 = vpop.permute.xlu0 %1267
        %1271 = vset.pattern.permute.xlu0 0
        %1272 = vperm.xlu0 %1271, %v1246
        %v1273 = vpop.permute.xlu0 %1272
        %1276 = vset.pattern.permute.xlu0 0
        %1277 = vperm.xlu0 %1276, %v1247
        %v1278 = vpop.permute.xlu0 %1277
        %1281 = vset.pattern.permute.xlu0 0
        %1282 = vperm.xlu0 %1281, %v1248
        %v1283 = vpop.permute.xlu0 %1282
        %1286 = vset.pattern.permute.xlu0 0
        %1287 = vperm.xlu0 %1286, %v1249
        %v1288 = vpop.permute.xlu0 %1287
        %1291 = vset.pattern.permute.xlu0 0
        %1292 = vperm.xlu0 %1291, %v1250
        %v1293 = vpop.permute.xlu0 %1292
        %1296 = vset.pattern.permute.xlu0 0
        %1297 = vperm.xlu0 %1296, %v1251
        %v1298 = vpop.permute.xlu0 %1297
        %1301 = vset.pattern.permute.xlu0 0
        %1302 = vperm.xlu0 %1301, %v1252
        %v1303 = vpop.permute.xlu0 %1302
        %1306 = vset.pattern.permute.xlu0 0
        %1307 = vperm.xlu0 %1306, %v1253
        %v1308 = vpop.permute.xlu0 %1307
        %1311 = vset.pattern.permute.xlu0 0
        %1312 = vperm.xlu0 %1311, %v1254
        %v1313 = vpop.permute.xlu0 %1312
        %1316 = vset.pattern.permute.xlu0 0
        %1317 = vperm.xlu0 %1316, %v1255
        %v1318 = vpop.permute.xlu0 %1317
        %1321 = vset.pattern.permute.xlu0 0
        %1322 = vperm.xlu0 %1321, %v1256
        %v1323 = vpop.permute.xlu0 %1322
        %1326 = vset.pattern.permute.xlu0 0
        %1327 = vperm.xlu0 %1326, %v1257
        %v1328 = vpop.permute.xlu0 %1327
        %1331 = vset.pattern.permute.xlu0 0
        %1332 = vperm.xlu0 %1331, %v1258
        %v1333 = vpop.permute.xlu0 %1332
        %1336 = vset.pattern.permute.xlu0 0
        %1337 = vperm.xlu0 %1336, %v1259
        %v1338 = vpop.permute.xlu0 %1337
        %v1340 = vlaneseq
        %v1341 = vshrl.u32 %v1340, 7
        %v1342 = vsub.s32 3, %v1341
        %v1343 = vrot.slane %v402, %v1342
        %v1344 = vmul.f32 %v1263, %v1343
        %v1345 = vmul.f32 %v1268, %v1343
        %v1346 = vmul.f32 %v1273, %v1343
        %v1347 = vmul.f32 %v1278, %v1343
        %v1348 = vmul.f32 %v1283, %v1343
        %v1349 = vmul.f32 %v1288, %v1343
        %v1350 = vmul.f32 %v1293, %v1343
        %v1351 = vmul.f32 %v1298, %v1343
        %v1352 = vmul.f32 %v1303, %v1343
        %v1353 = vmul.f32 %v1308, %v1343
        %v1354 = vmul.f32 %v1313, %v1343
        %v1355 = vmul.f32 %v1318, %v1343
        %v1356 = vmul.f32 %v1323, %v1343
        %v1357 = vmul.f32 %v1328, %v1343
        %v1358 = vmul.f32 %v1333, %v1343
        %v1359 = vmul.f32 %v1338, %v1343
        %1360 = vset.pattern.permute.xlu0 1
        %1361 = vperm.xlu0 %1360, %v1244
        %v1362 = vpop.permute.xlu0 %1361
        %1364 = vset.pattern.permute.xlu0 1
        %1365 = vperm.xlu0 %1364, %v1245
        %v1366 = vpop.permute.xlu0 %1365
        %1368 = vset.pattern.permute.xlu0 1
        %1369 = vperm.xlu0 %1368, %v1246
        %v1370 = vpop.permute.xlu0 %1369
        %1372 = vset.pattern.permute.xlu0 1
        %1373 = vperm.xlu0 %1372, %v1247
        %v1374 = vpop.permute.xlu0 %1373
        %1376 = vset.pattern.permute.xlu0 1
        %1377 = vperm.xlu0 %1376, %v1248
        %v1378 = vpop.permute.xlu0 %1377
        %1380 = vset.pattern.permute.xlu0 1
        %1381 = vperm.xlu0 %1380, %v1249
        %v1382 = vpop.permute.xlu0 %1381
        %1384 = vset.pattern.permute.xlu0 1
        %1385 = vperm.xlu0 %1384, %v1250
        %v1386 = vpop.permute.xlu0 %1385
        %1388 = vset.pattern.permute.xlu0 1
        %1389 = vperm.xlu0 %1388, %v1251
        %v1390 = vpop.permute.xlu0 %1389
        %1392 = vset.pattern.permute.xlu0 1
        %1393 = vperm.xlu0 %1392, %v1252
        %v1394 = vpop.permute.xlu0 %1393
        %1396 = vset.pattern.permute.xlu0 1
        %1397 = vperm.xlu0 %1396, %v1253
        %v1398 = vpop.permute.xlu0 %1397
        %1400 = vset.pattern.permute.xlu0 1
        %1401 = vperm.xlu0 %1400, %v1254
        %v1402 = vpop.permute.xlu0 %1401
        %1404 = vset.pattern.permute.xlu0 1
        %1405 = vperm.xlu0 %1404, %v1255
        %v1406 = vpop.permute.xlu0 %1405
        %1408 = vset.pattern.permute.xlu0 1
        %1409 = vperm.xlu0 %1408, %v1256
        %v1410 = vpop.permute.xlu0 %1409
        %1412 = vset.pattern.permute.xlu0 1
        %1413 = vperm.xlu0 %1412, %v1257
        %v1414 = vpop.permute.xlu0 %1413
        %1416 = vset.pattern.permute.xlu0 1
        %1417 = vperm.xlu0 %1416, %v1258
        %v1418 = vpop.permute.xlu0 %1417
        %1420 = vset.pattern.permute.xlu0 1
        %1421 = vperm.xlu0 %1420, %v1259
        %v1422 = vpop.permute.xlu0 %1421
        %v1424 = vlaneseq
        %v1425 = vshrl.u32 %v1424, 7
        %v1426 = vsub.s32 4, %v1425
        %v1427 = vrot.slane %v402, %v1426
        %v1428 = vmul.f32 %v1362, %v1427
        %v1429 = vmul.f32 %v1366, %v1427
        %v1430 = vmul.f32 %v1370, %v1427
        %v1431 = vmul.f32 %v1374, %v1427
        %v1432 = vmul.f32 %v1378, %v1427
        %v1433 = vmul.f32 %v1382, %v1427
        %v1434 = vmul.f32 %v1386, %v1427
        %v1435 = vmul.f32 %v1390, %v1427
        %v1436 = vmul.f32 %v1394, %v1427
        %v1437 = vmul.f32 %v1398, %v1427
        %v1438 = vmul.f32 %v1402, %v1427
        %v1439 = vmul.f32 %v1406, %v1427
        %v1440 = vmul.f32 %v1410, %v1427
        %v1441 = vmul.f32 %v1414, %v1427
        %v1442 = vmul.f32 %v1418, %v1427
        %v1443 = vmul.f32 %v1422, %v1427
        %v1444 = vadd.f32 %v1344, %v1428
        %v1445 = vadd.f32 %v1345, %v1429
        %v1446 = vadd.f32 %v1346, %v1430
        %v1447 = vadd.f32 %v1347, %v1431
        %v1448 = vadd.f32 %v1348, %v1432
        %v1449 = vadd.f32 %v1349, %v1433
        %v1450 = vadd.f32 %v1350, %v1434
        %v1451 = vadd.f32 %v1351, %v1435
        %v1452 = vadd.f32 %v1352, %v1436
        %v1453 = vadd.f32 %v1353, %v1437
        %v1454 = vadd.f32 %v1354, %v1438
        %v1455 = vadd.f32 %v1355, %v1439
        %v1456 = vadd.f32 %v1356, %v1440
        %v1457 = vadd.f32 %v1357, %v1441
        %v1458 = vadd.f32 %v1358, %v1442
        %v1459 = vadd.f32 %v1359, %v1443
        %v1460 = vlaneseq
        %v1461 = vshrl.u32 %v1460, 7
        %v1462 = vsub.s32 5, %v1461
        %v1463 = vrot.slane %v402, %v1462
        %v1464 = vadd.f32 %v1444, %v1463
        %v1465 = vadd.f32 %v1445, %v1463
        %v1466 = vadd.f32 %v1446, %v1463
        %v1467 = vadd.f32 %v1447, %v1463
        %v1468 = vadd.f32 %v1448, %v1463
        %v1469 = vadd.f32 %v1449, %v1463
        %v1470 = vadd.f32 %v1450, %v1463
        %v1471 = vadd.f32 %v1451, %v1463
        %v1472 = vadd.f32 %v1452, %v1463
        %v1473 = vadd.f32 %v1453, %v1463
        %v1474 = vadd.f32 %v1454, %v1463
        %v1475 = vadd.f32 %v1455, %v1463
        %v1476 = vadd.f32 %v1456, %v1463
        %v1477 = vadd.f32 %v1457, %v1463
        %v1478 = vadd.f32 %v1458, %v1463
        %v1479 = vadd.f32 %v1459, %v1463
        %v1480 = vmax.f32 %v1464, 0.0
        %v1481 = vmax.f32 %v1465, 0.0
        %v1482 = vmax.f32 %v1466, 0.0
        %v1483 = vmax.f32 %v1467, 0.0
        %v1484 = vmax.f32 %v1468, 0.0
        %v1485 = vmax.f32 %v1469, 0.0
        %v1486 = vmax.f32 %v1470, 0.0
        %v1487 = vmax.f32 %v1471, 0.0
        %v1488 = vmax.f32 %v1472, 0.0
        %v1489 = vmax.f32 %v1473, 0.0
        %v1490 = vmax.f32 %v1474, 0.0
        %v1491 = vmax.f32 %v1475, 0.0
        %v1492 = vmax.f32 %v1476, 0.0
        %v1493 = vmax.f32 %v1477, 0.0
        %v1494 = vmax.f32 %v1478, 0.0
        %v1495 = vmax.f32 %v1479, 0.0
        %v1496 = vpack.c.bf16 %v1481, %v1480
        %v1497 = vpack.c.bf16 %v1483, %v1482
        %v1498 = vpack.c.bf16 %v1485, %v1484
        %v1499 = vpack.c.bf16 %v1487, %v1486
        %v1500 = vpack.c.bf16 %v1489, %v1488
        %v1501 = vpack.c.bf16 %v1491, %v1490
        %v1502 = vpack.c.bf16 %v1493, %v1492
        %v1503 = vpack.c.bf16 %v1495, %v1494
        %v1504 = vld [vmem:[%s5] sm:$0xf]
        %v1505 = vld [vmem:[%s5 + $0x4] sm:$0xf]
        %v1506 = vld [vmem:[%s5 + $0x8] sm:$0xf]
        %v1507 = vld [vmem:[%s5 + $0xc] sm:$0xf]
        %v1508 = vld [vmem:[%s5 + $0x10] sm:$0xf]
        %v1509 = vld [vmem:[%s5 + $0x14] sm:$0xf]
        %v1510 = vld [vmem:[%s5 + $0x18] sm:$0xf]
        %v1511 = vld [vmem:[%s5 + $0x1c] sm:$0xf]
        %v1512 = vlaneseq
        %v1513 = vshrl.u32 %v1512, 7
        %v1514 = vsub.s32 6, %v1513
        %v1515 = vrot.slane %v402, %v1514
        %v1524 = vunpack.c.l.b16 %v1504
        %v1525 = vunpack.c.l.b16 %v1505
        %v1526 = vunpack.c.l.b16 %v1506
        %v1527 = vunpack.c.l.b16 %v1507
        %v1528 = vunpack.c.l.b16 %v1508
        %v1529 = vunpack.c.l.b16 %v1509
        %v1530 = vunpack.c.l.b16 %v1510
        %v1531 = vunpack.c.l.b16 %v1511
        %v1532 = vpack.c.b16 %v1525, %v1524
        %v1533 = vpack.c.b16 %v1527, %v1526
        %v1534 = vpack.c.b16 %v1529, %v1528
        %v1535 = vpack.c.b16 %v1531, %v1530
        %v1541 = vsel %vm978, %v1496, 0
        %v1544 = vsel %vm978, %v1497, 0
        %v1547 = vsel %vm978, %v1498, 0
        %v1550 = vsel %vm978, %v1499, 0
        %v1553 = vsel %vm978, %v1500, 0
        %v1556 = vsel %vm978, %v1501, 0
        %v1559 = vsel %vm978, %v1502, 0
        %v1562 = vsel %vm978, %v1503, 0
        %1564 = vmatprep.subr.bf16.mxu0 0
        %1565 = vmatpush1.bf16.msra.mxu0 %v1532
        %1566 = vmatprep.subr.bf16.mxu0 0
        %1567 = vmatpush1.bf16.msra.mxu0 %v1533
        %1568 = vmatprep.subr.bf16.mxu0 0
        %1569 = vmatpush1.bf16.msra.mxu0 %v1534
        %1570 = vmatprep.subr.bf16.mxu0 0
        %1571 = vmatpush1.bf16.msra.mxu0 %v1535
        %1572 = vmatprep.subr.bf16.mxu0 0
        %1573 = vmatpush1.bf16.msra.mxu0 0
        %1574 = vmatprep.subr.bf16.mxu0 0
        %1575 = vmatpush1.bf16.msra.mxu0 0
        %1576 = vmatprep.subr.bf16.mxu0 0
        %1577 = vmatpush1.bf16.msra.mxu0 0
        %1578 = vmatprep.subr.bf16.mxu0 0
        %1579 = vmatpush1.bf16.msra.mxu0 0
        %1580 = vmatprep.subr.bf16.mxu0 0
        %1581 = vmatpush1.bf16.msra.mxu0 0
        %1582 = vmatprep.subr.bf16.mxu0 0
        %1583 = vmatpush1.bf16.msra.mxu0 0
        %1584 = vmatprep.subr.bf16.mxu0 0
        %1585 = vmatpush1.bf16.msra.mxu0 0
        %1586 = vmatprep.subr.bf16.mxu0 0
        %1587 = vmatpush1.bf16.msra.mxu0 0
        %1588 = vmatprep.subr.bf16.mxu0 0
        %1589 = vmatpush1.bf16.msra.mxu0 0
        %1590 = vmatprep.subr.bf16.mxu0 0
        %1591 = vmatpush1.bf16.msra.mxu0 0
        %1592 = vmatprep.subr.bf16.mxu0 0
        %1593 = vmatpush1.bf16.msra.mxu0 0
        %1594 = vmatprep.subr.bf16.mxu0 0
        %1595 = vmatpush1.bf16.msra.mxu0 0
        %1596 = vmatprep.mubr.bf16.mxu0 0
        %1597 = vmatmul.mubr.bf16.gmra.mrb[0].mxu0 %v1541
        %v1598 = vpop.f32.mrb[0].mxu0
        %v1599 = vadd.f32 %v1515, %v1598
        %v1600 = vpop.f32.mrb[0].mxu0
        %v1601 = vpop.f32.mrb[0].mxu0
        %v1602 = vadd.f32 %v1515, %v1601
        %v1603 = vpop.f32.mrb[0].mxu0
        %1604 = vmatprep.mubr.bf16.mxu0 0
        %1605 = vmatmul.mubr.bf16.gmra.mrb[0].mxu0 %v1544
        %v1606 = vpop.f32.mrb[0].mxu0
        %v1607 = vadd.f32 %v1515, %v1606
        %v1608 = vpop.f32.mrb[0].mxu0
        %v1609 = vpop.f32.mrb[0].mxu0
        %v1610 = vadd.f32 %v1515, %v1609
        %v1611 = vpop.f32.mrb[0].mxu0
        %1612 = vmatprep.mubr.bf16.mxu0 0
        %1613 = vmatmul.mubr.bf16.gmra.mrb[0].mxu0 %v1547
        %v1614 = vpop.f32.mrb[0].mxu0
        %v1615 = vadd.f32 %v1515, %v1614
        %v1616 = vpop.f32.mrb[0].mxu0
        %v1617 = vpop.f32.mrb[0].mxu0
        %v1618 = vadd.f32 %v1515, %v1617
        %v1619 = vpop.f32.mrb[0].mxu0
        %1620 = vmatprep.mubr.bf16.mxu0 0
        %1621 = vmatmul.mubr.bf16.gmra.mrb[0].mxu0 %v1550
        %v1622 = vpop.f32.mrb[0].mxu0
        %v1623 = vadd.f32 %v1515, %v1622
        %v1624 = vpop.f32.mrb[0].mxu0
        %v1625 = vpop.f32.mrb[0].mxu0
        %v1626 = vadd.f32 %v1515, %v1625
        %v1627 = vpop.f32.mrb[0].mxu0
        %1628 = vmatprep.mubr.bf16.mxu0 0
        %1629 = vmatmul.mubr.bf16.gmra.mrb[0].mxu0 %v1553
        %v1630 = vpop.f32.mrb[0].mxu0
        %v1631 = vadd.f32 %v1515, %v1630
        %v1632 = vpop.f32.mrb[0].mxu0
        %v1633 = vpop.f32.mrb[0].mxu0
        %v1634 = vadd.f32 %v1515, %v1633
        %v1635 = vpop.f32.mrb[0].mxu0
        %1636 = vmatprep.mubr.bf16.mxu0 0
        %1637 = vmatmul.mubr.bf16.gmra.mrb[0].mxu0 %v1556
        %v1638 = vpop.f32.mrb[0].mxu0
        %v1639 = vadd.f32 %v1515, %v1638
        %v1640 = vpop.f32.mrb[0].mxu0
        %v1641 = vpop.f32.mrb[0].mxu0
        %v1642 = vadd.f32 %v1515, %v1641
        %v1643 = vpop.f32.mrb[0].mxu0
        %1644 = vmatprep.mubr.bf16.mxu0 0
        %1645 = vmatmul.mubr.bf16.gmra.mrb[0].mxu0 %v1559
        %v1646 = vpop.f32.mrb[0].mxu0
        %v1647 = vadd.f32 %v1515, %v1646
        %v1648 = vpop.f32.mrb[0].mxu0
        %v1649 = vpop.f32.mrb[0].mxu0
        %v1650 = vadd.f32 %v1515, %v1649
        %v1651 = vpop.f32.mrb[0].mxu0
        %1652 = vmatprep.mubr.bf16.mxu0 0
        %1653 = vmatmul.mubr.bf16.gmra.mrb[0].mxu0 %v1562
        %v1654 = vpop.f32.mrb[0].mxu0
        %v1655 = vadd.f32 %v1515, %v1654
        %v1656 = vpop.f32.mrb[0].mxu0
        %v1657 = vpop.f32.mrb[0].mxu0
        %v1658 = vadd.f32 %v1515, %v1657
        %v1659 = vpop.f32.mrb[0].mxu0
        %1660 = vdwg.mxu0
        %v1661 = vmax.f32 %v1599, 0.0
        %v1662 = vmax.f32 %v1602, 0.0
        %v1663 = vmax.f32 %v1607, 0.0
        %v1664 = vmax.f32 %v1610, 0.0
        %v1665 = vmax.f32 %v1615, 0.0
        %v1666 = vmax.f32 %v1618, 0.0
        %v1667 = vmax.f32 %v1623, 0.0
        %v1668 = vmax.f32 %v1626, 0.0
        %v1669 = vmax.f32 %v1631, 0.0
        %v1670 = vmax.f32 %v1634, 0.0
        %v1671 = vmax.f32 %v1639, 0.0
        %v1672 = vmax.f32 %v1642, 0.0
        %v1673 = vmax.f32 %v1647, 0.0
        %v1674 = vmax.f32 %v1650, 0.0
        %v1675 = vmax.f32 %v1655, 0.0
        %v1676 = vmax.f32 %v1658, 0.0
        %v1677 = vpack.c.bf16 %v1662, %v1661
        %v1678 = vpack.c.bf16 %v1664, %v1663
        %v1679 = vpack.c.bf16 %v1666, %v1665
        %v1680 = vpack.c.bf16 %v1668, %v1667
        %v1681 = vpack.c.bf16 %v1670, %v1669
        %v1682 = vpack.c.bf16 %v1672, %v1671
        %v1683 = vpack.c.bf16 %v1674, %v1673
        %v1684 = vpack.c.bf16 %v1676, %v1675
        %v1685 = vld [vmem:[#allocation5] sm:$0xff]
        %v1686 = vld [vmem:[#allocation5 + $0x8] sm:$0xff]
        %v1687 = vld [vmem:[#allocation5 + $0x10] sm:$0xff]
        %v1688 = vld [vmem:[#allocation5 + $0x18] sm:$0xff]
        %v1689 = vld [vmem:[#allocation5 + $0x20] sm:$0xff]
        %v1690 = vld [vmem:[#allocation5 + $0x28] sm:$0xff]
        %v1691 = vld [vmem:[#allocation5 + $0x30] sm:$0xff]
        %v1692 = vld [vmem:[#allocation5 + $0x38] sm:$0xff]
        %v1693 = vld [vmem:[#allocation5 + $0x40] sm:$0xff]
        %v1694 = vld [vmem:[#allocation5 + $0x48] sm:$0xff]
        %v1695 = vld [vmem:[#allocation5 + $0x50] sm:$0xff]
        %v1696 = vld [vmem:[#allocation5 + $0x58] sm:$0xff]
        %v1697 = vld [vmem:[#allocation5 + $0x60] sm:$0xff]
        %v1698 = vld [vmem:[#allocation5 + $0x68] sm:$0xff]
        %v1699 = vld [vmem:[#allocation5 + $0x70] sm:$0xff]
        %v1700 = vld [vmem:[#allocation5 + $0x78] sm:$0xff]
        %v1701 = vlaneseq
        %v1702 = vshrl.u32 %v1701, 7
        %v1703 = vsub.s32 7, %v1702
        %v1704 = vrot.slane %v402, %v1703
        %v1705 = vlaneseq
        %v1706 = vshrl.u32 %v1705, 7
        %v1707 = vsub.s32 7, %v1706
        %v1708 = vrot.slane %v403, %v1707
        %v1725 = vunpack.c.l.b16 %v1685
        %v1726 = vunpack.c.h.b16 %v1685
        %v1727 = vunpack.c.l.b16 %v1686
        %v1728 = vunpack.c.h.b16 %v1686
        %v1729 = vunpack.c.l.b16 %v1687
        %v1730 = vunpack.c.h.b16 %v1687
        %v1731 = vunpack.c.l.b16 %v1688
        %v1732 = vunpack.c.h.b16 %v1688
        %v1733 = vunpack.c.l.b16 %v1689
        %v1734 = vunpack.c.h.b16 %v1689
        %v1735 = vunpack.c.l.b16 %v1690
        %v1736 = vunpack.c.h.b16 %v1690
        %v1737 = vunpack.c.l.b16 %v1691
        %v1738 = vunpack.c.h.b16 %v1691
        %v1739 = vunpack.c.l.b16 %v1692
        %v1740 = vunpack.c.h.b16 %v1692
        %v1741 = vunpack.c.l.b16 %v1693
        %v1742 = vunpack.c.h.b16 %v1693
        %v1743 = vunpack.c.l.b16 %v1694
        %v1744 = vunpack.c.h.b16 %v1694
        %v1745 = vunpack.c.l.b16 %v1695
        %v1746 = vunpack.c.h.b16 %v1695
        %v1747 = vunpack.c.l.b16 %v1696
        %v1748 = vunpack.c.h.b16 %v1696
        %v1749 = vunpack.c.l.b16 %v1697
        %v1750 = vunpack.c.h.b16 %v1697
        %v1751 = vunpack.c.l.b16 %v1698
        %v1752 = vunpack.c.h.b16 %v1698
        %v1753 = vunpack.c.l.b16 %v1699
        %v1754 = vunpack.c.h.b16 %v1699
        %v1755 = vunpack.c.l.b16 %v1700
        %v1756 = vunpack.c.h.b16 %v1700
        %v1757 = vpack.c.b16 %v1727, %v1725
        %v1758 = vpack.c.b16 %v1728, %v1726
        %v1759 = vpack.c.b16 %v1731, %v1729
        %v1760 = vpack.c.b16 %v1732, %v1730
        %v1761 = vpack.c.b16 %v1735, %v1733
        %v1762 = vpack.c.b16 %v1736, %v1734
        %v1763 = vpack.c.b16 %v1739, %v1737
        %v1764 = vpack.c.b16 %v1740, %v1738
        %v1765 = vpack.c.b16 %v1743, %v1741
        %v1766 = vpack.c.b16 %v1744, %v1742
        %v1767 = vpack.c.b16 %v1747, %v1745
        %v1768 = vpack.c.b16 %v1748, %v1746
        %v1769 = vpack.c.b16 %v1751, %v1749
        %v1770 = vpack.c.b16 %v1752, %v1750
        %v1771 = vpack.c.b16 %v1755, %v1753
        %v1772 = vpack.c.b16 %v1756, %v1754
        %1789 = vmatprep.subr.bf16.mxu0 %v1758
        %1790 = vmatpush1.bf16.msra.mxu0 %v1757
        %1791 = vmatprep.subr.bf16.mxu0 %v1760
        %1792 = vmatpush1.bf16.msra.mxu0 %v1759
        %1793 = vmatprep.subr.bf16.mxu0 %v1762
        %1794 = vmatpush1.bf16.msra.mxu0 %v1761
        %1795 = vmatprep.subr.bf16.mxu0 %v1764
        %1796 = vmatpush1.bf16.msra.mxu0 %v1763
        %1797 = vmatprep.subr.bf16.mxu0 %v1766
        %1798 = vmatpush1.bf16.msra.mxu0 %v1765
        %1799 = vmatprep.subr.bf16.mxu0 %v1768
        %1800 = vmatpush1.bf16.msra.mxu0 %v1767
        %1801 = vmatprep.subr.bf16.mxu0 %v1770
        %1802 = vmatpush1.bf16.msra.mxu0 %v1769
        %1803 = vmatprep.subr.bf16.mxu0 %v1772
        %1804 = vmatpush1.bf16.msra.mxu0 %v1771
        %1805 = vmatprep.subr.bf16.mxu0 0
        %1806 = vmatpush1.bf16.msra.mxu0 0
        %1807 = vmatprep.subr.bf16.mxu0 0
        %1808 = vmatpush1.bf16.msra.mxu0 0
        %1809 = vmatprep.subr.bf16.mxu0 0
        %1810 = vmatpush1.bf16.msra.mxu0 0
        %1811 = vmatprep.subr.bf16.mxu0 0
        %1812 = vmatpush1.bf16.msra.mxu0 0
        %1813 = vmatprep.subr.bf16.mxu0 0
        %1814 = vmatpush1.bf16.msra.mxu0 0
        %1815 = vmatprep.subr.bf16.mxu0 0
        %1816 = vmatpush1.bf16.msra.mxu0 0
        %1817 = vmatprep.subr.bf16.mxu0 0
        %1818 = vmatpush1.bf16.msra.mxu0 0
        %1819 = vmatprep.subr.bf16.mxu0 0
        %1820 = vmatpush1.bf16.msra.mxu0 0
        %1821 = vmatprep.mubr.bf16.mxu0 0
        %1822 = vmatmul.mubr.bf16.gmra.mrb[0].mxu0 %v1677
        %v1823 = vpop.f32.mrb[0].mxu0
        %v1824 = vadd.f32 %v1704, %v1823
        %v1825 = vpop.f32.mrb[0].mxu0
        %v1826 = vadd.f32 %v1708, %v1825
        %v1827 = vpop.f32.mrb[0].mxu0
        %v1828 = vadd.f32 %v1704, %v1827
        %v1829 = vpop.f32.mrb[0].mxu0
        %v1830 = vadd.f32 %v1708, %v1829
        %1831 = vmatprep.mubr.bf16.mxu0 0
        %1832 = vmatmul.mubr.bf16.gmra.mrb[0].mxu0 %v1678
        %v1833 = vpop.f32.mrb[0].mxu0
        %v1834 = vadd.f32 %v1704, %v1833
        %v1835 = vpop.f32.mrb[0].mxu0
        %v1836 = vadd.f32 %v1708, %v1835
        %v1837 = vpop.f32.mrb[0].mxu0
        %v1838 = vadd.f32 %v1704, %v1837
        %v1839 = vpop.f32.mrb[0].mxu0
        %v1840 = vadd.f32 %v1708, %v1839
        %1841 = vmatprep.mubr.bf16.mxu0 0
        %1842 = vmatmul.mubr.bf16.gmra.mrb[0].mxu0 %v1679
        %v1843 = vpop.f32.mrb[0].mxu0
        %v1844 = vadd.f32 %v1704, %v1843
        %v1845 = vpop.f32.mrb[0].mxu0
        %v1846 = vadd.f32 %v1708, %v1845
        %v1847 = vpop.f32.mrb[0].mxu0
        %v1848 = vadd.f32 %v1704, %v1847
        %v1849 = vpop.f32.mrb[0].mxu0
        %v1850 = vadd.f32 %v1708, %v1849
        %1851 = vmatprep.mubr.bf16.mxu0 0
        %1852 = vmatmul.mubr.bf16.gmra.mrb[0].mxu0 %v1680
        %v1853 = vpop.f32.mrb[0].mxu0
        %v1854 = vadd.f32 %v1704, %v1853
        %v1855 = vpop.f32.mrb[0].mxu0
        %v1856 = vadd.f32 %v1708, %v1855
        %v1857 = vpop.f32.mrb[0].mxu0
        %v1858 = vadd.f32 %v1704, %v1857
        %v1859 = vpop.f32.mrb[0].mxu0
        %v1860 = vadd.f32 %v1708, %v1859
        %1861 = vmatprep.mubr.bf16.mxu0 0
        %1862 = vmatmul.mubr.bf16.gmra.mrb[0].mxu0 %v1681
        %v1863 = vpop.f32.mrb[0].mxu0
        %v1864 = vadd.f32 %v1704, %v1863
        %v1865 = vpop.f32.mrb[0].mxu0
        %v1866 = vadd.f32 %v1708, %v1865
        %v1867 = vpop.f32.mrb[0].mxu0
        %v1868 = vadd.f32 %v1704, %v1867
        %v1869 = vpop.f32.mrb[0].mxu0
        %v1870 = vadd.f32 %v1708, %v1869
        %1871 = vmatprep.mubr.bf16.mxu0 0
        %1872 = vmatmul.mubr.bf16.gmra.mrb[0].mxu0 %v1682
        %v1873 = vpop.f32.mrb[0].mxu0
        %v1874 = vadd.f32 %v1704, %v1873
        %v1875 = vpop.f32.mrb[0].mxu0
        %v1876 = vadd.f32 %v1708, %v1875
        %v1877 = vpop.f32.mrb[0].mxu0
        %v1878 = vadd.f32 %v1704, %v1877
        %v1879 = vpop.f32.mrb[0].mxu0
        %v1880 = vadd.f32 %v1708, %v1879
        %1881 = vmatprep.mubr.bf16.mxu0 0
        %1882 = vmatmul.mubr.bf16.gmra.mrb[0].mxu0 %v1683
        %v1883 = vpop.f32.mrb[0].mxu0
        %v1884 = vadd.f32 %v1704, %v1883
        %v1885 = vpop.f32.mrb[0].mxu0
        %v1886 = vadd.f32 %v1708, %v1885
        %v1887 = vpop.f32.mrb[0].mxu0
        %v1888 = vadd.f32 %v1704, %v1887
        %v1889 = vpop.f32.mrb[0].mxu0
        %v1890 = vadd.f32 %v1708, %v1889
        %1891 = vmatprep.mubr.bf16.mxu0 0
        %1892 = vmatmul.mubr.bf16.gmra.mrb[0].mxu0 %v1684
        %v1893 = vpop.f32.mrb[0].mxu0
        %v1894 = vadd.f32 %v1704, %v1893
        %v1895 = vpop.f32.mrb[0].mxu0
        %v1896 = vadd.f32 %v1708, %v1895
        %v1897 = vpop.f32.mrb[0].mxu0
        %v1898 = vadd.f32 %v1704, %v1897
        %v1899 = vpop.f32.mrb[0].mxu0
        %v1900 = vadd.f32 %v1708, %v1899
        %1901 = vdwg.mxu0
        %v1902 = vxor.u32 %v1824, 2147483648
        %v1903 = vxor.u32 %v1826, 2147483648
        %v1904 = vxor.u32 %v1828, 2147483648
        %v1905 = vxor.u32 %v1830, 2147483648
        %v1906 = vxor.u32 %v1834, 2147483648
        %v1907 = vxor.u32 %v1836, 2147483648
        %v1908 = vxor.u32 %v1838, 2147483648
        %v1909 = vxor.u32 %v1840, 2147483648
        %v1910 = vxor.u32 %v1844, 2147483648
        %v1911 = vxor.u32 %v1846, 2147483648
        %v1912 = vxor.u32 %v1848, 2147483648
        %v1913 = vxor.u32 %v1850, 2147483648
        %v1914 = vxor.u32 %v1854, 2147483648
        %v1915 = vxor.u32 %v1856, 2147483648
        %v1916 = vxor.u32 %v1858, 2147483648
        %v1917 = vxor.u32 %v1860, 2147483648
        %v1918 = vxor.u32 %v1864, 2147483648
        %v1919 = vxor.u32 %v1866, 2147483648
        %v1920 = vxor.u32 %v1868, 2147483648
        %v1921 = vxor.u32 %v1870, 2147483648
        %v1922 = vxor.u32 %v1874, 2147483648
        %v1923 = vxor.u32 %v1876, 2147483648
        %v1924 = vxor.u32 %v1878, 2147483648
        %v1925 = vxor.u32 %v1880, 2147483648
        %v1926 = vxor.u32 %v1884, 2147483648
        %v1927 = vxor.u32 %v1886, 2147483648
        %v1928 = vxor.u32 %v1888, 2147483648
        %v1929 = vxor.u32 %v1890, 2147483648
        %v1930 = vxor.u32 %v1894, 2147483648
        %v1931 = vxor.u32 %v1896, 2147483648
        %v1932 = vxor.u32 %v1898, 2147483648
        %v1933 = vxor.u32 %v1900, 2147483648
        %v1934 = vmul.f32 %v1902, 1.442695
        %v1935 = vpow.pop %v1934
        %v1936 = vmul.f32 %v1903, 1.442695
        %v1937 = vpow.pop %v1936
        %v1938 = vmul.f32 %v1904, 1.442695
        %v1939 = vpow.pop %v1938
        %v1940 = vmul.f32 %v1905, 1.442695
        %v1941 = vpow.pop %v1940
        %v1942 = vmul.f32 %v1906, 1.442695
        %v1943 = vpow.pop %v1942
        %v1944 = vmul.f32 %v1907, 1.442695
        %v1945 = vpow.pop %v1944
        %v1946 = vmul.f32 %v1908, 1.442695
        %v1947 = vpow.pop %v1946
        %v1948 = vmul.f32 %v1909, 1.442695
        %v1949 = vpow.pop %v1948
        %v1950 = vmul.f32 %v1910, 1.442695
        %v1951 = vpow.pop %v1950
        %v1952 = vmul.f32 %v1911, 1.442695
        %v1953 = vpow.pop %v1952
        %v1954 = vmul.f32 %v1912, 1.442695
        %v1955 = vpow.pop %v1954
        %v1956 = vmul.f32 %v1913, 1.442695
        %v1957 = vpow.pop %v1956
        %v1958 = vmul.f32 %v1914, 1.442695
        %v1959 = vpow.pop %v1958
        %v1960 = vmul.f32 %v1915, 1.442695
        %v1961 = vpow.pop %v1960
        %v1962 = vmul.f32 %v1916, 1.442695
        %v1963 = vpow.pop %v1962
        %v1964 = vmul.f32 %v1917, 1.442695
        %v1965 = vpow.pop %v1964
        %v1966 = vmul.f32 %v1918, 1.442695
        %v1967 = vpow.pop %v1966
        %v1968 = vmul.f32 %v1919, 1.442695
        %v1969 = vpow.pop %v1968
        %v1970 = vmul.f32 %v1920, 1.442695
        %v1971 = vpow.pop %v1970
        %v1972 = vmul.f32 %v1921, 1.442695
        %v1973 = vpow.pop %v1972
        %v1974 = vmul.f32 %v1922, 1.442695
        %v1975 = vpow.pop %v1974
        %v1976 = vmul.f32 %v1923, 1.442695
        %v1977 = vpow.pop %v1976
        %v1978 = vmul.f32 %v1924, 1.442695
        %v1979 = vpow.pop %v1978
        %v1980 = vmul.f32 %v1925, 1.442695
        %v1981 = vpow.pop %v1980
        %v1982 = vmul.f32 %v1926, 1.442695
        %v1983 = vpow.pop %v1982
        %v1984 = vmul.f32 %v1927, 1.442695
        %v1985 = vpow.pop %v1984
        %v1986 = vmul.f32 %v1928, 1.442695
        %v1987 = vpow.pop %v1986
        %v1988 = vmul.f32 %v1929, 1.442695
        %v1989 = vpow.pop %v1988
        %v1990 = vmul.f32 %v1930, 1.442695
        %v1991 = vpow.pop %v1990
        %v1992 = vmul.f32 %v1931, 1.442695
        %v1993 = vpow.pop %v1992
        %v1994 = vmul.f32 %v1932, 1.442695
        %v1995 = vpow.pop %v1994
        %v1996 = vmul.f32 %v1933, 1.442695
        %v1997 = vpow.pop %v1996
        %v1998 = vadd.f32 %v1935, 1.0
        %v1999 = vadd.f32 %v1937, 1.0
        %v2000 = vadd.f32 %v1939, 1.0
        %v2001 = vadd.f32 %v1941, 1.0
        %v2002 = vadd.f32 %v1943, 1.0
        %v2003 = vadd.f32 %v1945, 1.0
        %v2004 = vadd.f32 %v1947, 1.0
        %v2005 = vadd.f32 %v1949, 1.0
        %v2006 = vadd.f32 %v1951, 1.0
        %v2007 = vadd.f32 %v1953, 1.0
        %v2008 = vadd.f32 %v1955, 1.0
        %v2009 = vadd.f32 %v1957, 1.0
        %v2010 = vadd.f32 %v1959, 1.0
        %v2011 = vadd.f32 %v1961, 1.0
        %v2012 = vadd.f32 %v1963, 1.0
        %v2013 = vadd.f32 %v1965, 1.0
        %v2014 = vadd.f32 %v1967, 1.0
        %v2015 = vadd.f32 %v1969, 1.0
        %v2016 = vadd.f32 %v1971, 1.0
        %v2017 = vadd.f32 %v1973, 1.0
        %v2018 = vadd.f32 %v1975, 1.0
        %v2019 = vadd.f32 %v1977, 1.0
        %v2020 = vadd.f32 %v1979, 1.0
        %v2021 = vadd.f32 %v1981, 1.0
        %v2022 = vadd.f32 %v1983, 1.0
        %v2023 = vadd.f32 %v1985, 1.0
        %v2024 = vadd.f32 %v1987, 1.0
        %v2025 = vadd.f32 %v1989, 1.0
        %v2026 = vadd.f32 %v1991, 1.0
        %v2027 = vadd.f32 %v1993, 1.0
        %v2028 = vadd.f32 %v1995, 1.0
        %v2029 = vadd.f32 %v1997, 1.0
        %v2030 = vrcp.pop %v1998
        %v2031 = vmul.f32 1.0, %v2030
        %v2032 = vrcp.pop %v1999
        %v2033 = vmul.f32 1.0, %v2032
        %v2034 = vrcp.pop %v2000
        %v2035 = vmul.f32 1.0, %v2034
        %v2036 = vrcp.pop %v2001
        %v2037 = vmul.f32 1.0, %v2036
        %v2038 = vrcp.pop %v2002
        %v2039 = vmul.f32 1.0, %v2038
        %v2040 = vrcp.pop %v2003
        %v2041 = vmul.f32 1.0, %v2040
        %v2042 = vrcp.pop %v2004
        %v2043 = vmul.f32 1.0, %v2042
        %v2044 = vrcp.pop %v2005
        %v2045 = vmul.f32 1.0, %v2044
        %v2046 = vrcp.pop %v2006
        %v2047 = vmul.f32 1.0, %v2046
        %v2048 = vrcp.pop %v2007
        %v2049 = vmul.f32 1.0, %v2048
        %v2050 = vrcp.pop %v2008
        %v2051 = vmul.f32 1.0, %v2050
        %v2052 = vrcp.pop %v2009
        %v2053 = vmul.f32 1.0, %v2052
        %v2054 = vrcp.pop %v2010
        %v2055 = vmul.f32 1.0, %v2054
        %v2056 = vrcp.pop %v2011
        %v2057 = vmul.f32 1.0, %v2056
        %v2058 = vrcp.pop %v2012
        %v2059 = vmul.f32 1.0, %v2058
        %v2060 = vrcp.pop %v2013
        %v2061 = vmul.f32 1.0, %v2060
        %v2062 = vrcp.pop %v2014
        %v2063 = vmul.f32 1.0, %v2062
        %v2064 = vrcp.pop %v2015
        %v2065 = vmul.f32 1.0, %v2064
        %v2066 = vrcp.pop %v2016
        %v2067 = vmul.f32 1.0, %v2066
        %v2068 = vrcp.pop %v2017
        %v2069 = vmul.f32 1.0, %v2068
        %v2070 = vrcp.pop %v2018
        %v2071 = vmul.f32 1.0, %v2070
        %v2072 = vrcp.pop %v2019
        %v2073 = vmul.f32 1.0, %v2072
        %v2074 = vrcp.pop %v2020
        %v2075 = vmul.f32 1.0, %v2074
        %v2076 = vrcp.pop %v2021
        %v2077 = vmul.f32 1.0, %v2076
        %v2078 = vrcp.pop %v2022
        %v2079 = vmul.f32 1.0, %v2078
        %v2080 = vrcp.pop %v2023
        %v2081 = vmul.f32 1.0, %v2080
        %v2082 = vrcp.pop %v2024
        %v2083 = vmul.f32 1.0, %v2082
        %v2084 = vrcp.pop %v2025
        %v2085 = vmul.f32 1.0, %v2084
        %v2086 = vrcp.pop %v2026
        %v2087 = vmul.f32 1.0, %v2086
        %v2088 = vrcp.pop %v2027
        %v2089 = vmul.f32 1.0, %v2088
        %v2090 = vrcp.pop %v2028
        %v2091 = vmul.f32 1.0, %v2090
        %v2092 = vrcp.pop %v2029
        %v2093 = vmul.f32 1.0, %v2092
        %2094 = vst [vmem:[%s378] sm:$0xff] %v2031
        %2095 = vst [vmem:[%s378 + $0x8] sm:$0xff] %v2033
        %2096 = vst [vmem:[%s378 + $0x10] sm:$0xff] %v2035
        %2097 = vst [vmem:[%s378 + $0x18] sm:$0xff] %v2037
        %2098 = vst [vmem:[%s378 + $0x20] sm:$0xff] %v2039
        %2099 = vst [vmem:[%s378 + $0x28] sm:$0xff] %v2041
        %2100 = vst [vmem:[%s378 + $0x30] sm:$0xff] %v2043
        %2101 = vst [vmem:[%s378 + $0x38] sm:$0xff] %v2045
        %2102 = vst [vmem:[%s378 + $0x40] sm:$0xff] %v2047
        %2103 = vst [vmem:[%s378 + $0x48] sm:$0xff] %v2049
        %2104 = vst [vmem:[%s378 + $0x50] sm:$0xff] %v2051
        %2105 = vst [vmem:[%s378 + $0x58] sm:$0xff] %v2053
        %2106 = vst [vmem:[%s378 + $0x60] sm:$0xff] %v2055
        %2107 = vst [vmem:[%s378 + $0x68] sm:$0xff] %v2057
        %2108 = vst [vmem:[%s378 + $0x70] sm:$0xff] %v2059
        %2109 = vst [vmem:[%s378 + $0x78] sm:$0xff] %v2061
        %2110 = vst [vmem:[%s378 + $0x80] sm:$0xff] %v2063
        %2111 = vst [vmem:[%s378 + $0x88] sm:$0xff] %v2065
        %2112 = vst [vmem:[%s378 + $0x90] sm:$0xff] %v2067
        %2113 = vst [vmem:[%s378 + $0x98] sm:$0xff] %v2069
        %2114 = vst [vmem:[%s378 + $0xa0] sm:$0xff] %v2071
        %2115 = vst [vmem:[%s378 + $0xa8] sm:$0xff] %v2073
        %2116 = vst [vmem:[%s378 + $0xb0] sm:$0xff] %v2075
        %2117 = vst [vmem:[%s378 + $0xb8] sm:$0xff] %v2077
        %2118 = vst [vmem:[%s378 + $0xc0] sm:$0xff] %v2079
        %2119 = vst [vmem:[%s378 + $0xc8] sm:$0xff] %v2081
        %2120 = vst [vmem:[%s378 + $0xd0] sm:$0xff] %v2083
        %2121 = vst [vmem:[%s378 + $0xd8] sm:$0xff] %v2085
        %2122 = vst [vmem:[%s378 + $0xe0] sm:$0xff] %v2087
        %2123 = vst [vmem:[%s378 + $0xe8] sm:$0xff] %v2089
        %2124 = vst [vmem:[%s378 + $0xf0] sm:$0xff] %v2091
        %2125 = vst [vmem:[%s378 + $0xf8] sm:$0xff] %v2093
        %2126 = vst [vmem:[%s385] sm:$0xff] %v1038
        %2127 = vst [vmem:[%s385 + $0x8] sm:$0xff] %v1041
        %2128 = vst [vmem:[%s385 + $0x10] sm:$0xff] %v1046
        %2129 = vst [vmem:[%s385 + $0x18] sm:$0xff] %v1049
        %2130 = vst [vmem:[%s385 + $0x20] sm:$0xff] %v1054
        %2131 = vst [vmem:[%s385 + $0x28] sm:$0xff] %v1057
        %2132 = vst [vmem:[%s385 + $0x30] sm:$0xff] %v1062
        %2133 = vst [vmem:[%s385 + $0x38] sm:$0xff] %v1065
        %2134 = vst [vmem:[%s385 + $0x40] sm:$0xff] %v1070
        %2135 = vst [vmem:[%s385 + $0x48] sm:$0xff] %v1073
        %2136 = vst [vmem:[%s385 + $0x50] sm:$0xff] %v1078
        %2137 = vst [vmem:[%s385 + $0x58] sm:$0xff] %v1081
        %2138 = vst [vmem:[%s385 + $0x60] sm:$0xff] %v1086
        %2139 = vst [vmem:[%s385 + $0x68] sm:$0xff] %v1089
        %2140 = vst [vmem:[%s385 + $0x70] sm:$0xff] %v1094
        %2141 = vst [vmem:[%s385 + $0x78] sm:$0xff] %v1097
        %s2142 = sand.u32 %s215, 1
        %s2143 = scalar_lea.sflag [#allocation4], %s2142
        %s2144 = sand.u32 %s215, 1
        %s2145 = smul.addr %s2144, 256
        %s2146 = scalar_lea.vmem [#allocation7], %s2145
        %s2147 = sand.u32 %s241, 1
        %s2148 = scalar_lea.sflag [#allocation9], %s2147
        %s2149 = sand.u32 %s241, 1
        %s2150 = smul.addr %s2149, 128
        %s2151 = scalar_lea.vmem [#allocation8], %s2150
        // Predicated region
        $region61: #{tpu_custom_call.1} parent=51 // pred_check
          %p2152 = pneg %p225
        $region62: #{tpu_custom_call.1} parent=51 // pred_check_branch
          %2154 = sbr.rel (%p2152) target = $region64
        $region63: #{tpu_custom_call.1} parent=51 // pred_region
          %s2155 = smul.u32 16, %s29
          %s2157 = ssub.s32 4096, 4096
          %2158 = vsyncadd %s2143, %s2157
          %s2159 = smul.addr %s2155, 2
          %s2160 = smul.addr %s2159, 128
          %s2161 = scalar_lea.hbm %s8, %s2160
          %s2162 = sshll.u32 %s2146, 4
          %s2163 = int_to_ptr.vmem [resolvable:$true] %s2162
          %2168 = dma.vmem_to_hbm [thread:$0]  %s2163, 4096, %s2161, %s2143, 256, 256, 16
        $region64: #{tpu_custom_call.1} parent=51 // pred_fallthru
          _
        // Predicated region
        $region65: #{tpu_custom_call.1} parent=51 // pred_check
          %p2169 = pneg %p251
        $region66: #{tpu_custom_call.1} parent=51 // pred_check_branch
          %2171 = sbr.rel (%p2169) target = $region68
        $region67: #{tpu_custom_call.1} parent=51 // pred_region
          %s2172 = smul.u32 16, %s29
          %s2174 = ssub.s32 2048, 2048
          %2175 = vsyncadd %s2148, %s2174
          %s2176 = smul.addr %s2172, 128
          %s2177 = scalar_lea.hbm %s9, %s2176
          %s2178 = sshll.u32 %s2151, 4
          %s2179 = int_to_ptr.vmem [resolvable:$true] %s2178
          %2184 = dma.vmem_to_hbm [thread:$0]  %s2179, 2048, %s2177, %s2148, 128, 128, 8
        $region68: #{tpu_custom_call.1} parent=51 // pred_fallthru
          _
      $region52: #{tpu_custom_call.1} parent=5 // pred_fallthru
        _
      %p2185 = scmp.le.s32.totalorder 2, %s24
      // Predicated region
      $region69: #{tpu_custom_call.1} parent=5 // pred_check
        %p2186 = pneg %p2185
      $region70: #{tpu_custom_call.1} parent=5 // pred_check_branch
        %2188 = sbr.rel (%p2186) target = $region72
      $region71: #{tpu_custom_call.1} parent=5 // pred_region
        %s2189 = ssub.s32 %s24, 2
        // Predicated region
        $region73: #{tpu_custom_call.1} parent=71 // pred_check
          %p2190 = pneg %p231
        $region74: #{tpu_custom_call.1} parent=71 // pred_check_branch
          %2192 = sbr.rel (%p2190) target = $region76
        $region75: #{tpu_custom_call.1} parent=71 // pred_region
          %s2193 = sand.u32 %s216, 1
          %s2194 = scalar_lea.sflag [#allocation4], %s2193
          %s2195 = sand.u32 %s216, 1
          %s2196 = smul.addr %s2195, 256
          %s2197 = scalar_lea.vmem [#allocation7], %s2196
          %2198 = dma.done %s2194, 4096
        $region76: #{tpu_custom_call.1} parent=71 // pred_fallthru
          _
        // Predicated region
        $region77: #{tpu_custom_call.1} parent=71 // pred_check
          %p2199 = pneg %p257
        $region78: #{tpu_custom_call.1} parent=71 // pred_check_branch
          %2201 = sbr.rel (%p2199) target = $region80
        $region79: #{tpu_custom_call.1} parent=71 // pred_region
          %s2202 = sand.u32 %s242, 1
          %s2203 = scalar_lea.sflag [#allocation9], %s2202
          %s2204 = sand.u32 %s242, 1
          %s2205 = smul.addr %s2204, 128
          %s2206 = scalar_lea.vmem [#allocation8], %s2205
          %2207 = dma.done %s2203, 2048
        $region80: #{tpu_custom_call.1} parent=71 // pred_fallthru
          _
      $region72: #{tpu_custom_call.1} parent=5 // pred_fallthru
        _
    $region6: #{tpu_custom_call.1} parent=1 // loop_footer
      %s28 = sadd.s32 1, %s24
    $region7: #{tpu_custom_call.1} parent=1 // loop_footer_branch
      %23 = sbr.rel target = $region3
    $region8: #{tpu_custom_call.1} parent=1 // loop_exit
      _
    %2208 = vsyncpa [#allocation3], 1
    %s2209 = scalar_lea.sflag [#allocation3], 1
    %2210 = vsyncpa %s2209, 1
    %2211 = vsyncpa [#allocation6], 1
    %2212 = vsyncpa [#allocation4], 1
    %s2213 = scalar_lea.sflag [#allocation4], 1
    %2214 = vsyncpa %s2213, 1
    %2215 = vsyncpa [#allocation9], 1
    %s2216 = scalar_lea.sflag [#allocation9], 1
    %2217 = vsyncpa %s2216, 1

</llo_original>
